<compile_context>
chip_gen: v6e
topology: v6e:2x2x1
jax: 0.10.0
libtpu: 0.0.40
codegen_flags: <defaults>
</compile_context>

<pallas_src>
import functools

import jax
import jax.numpy as jnp
from jax.experimental import pallas as pl
from jax.experimental.pallas import tpu as pltpu

NUM_MLPS = 3
D_IN = 6        # per-MLP input/output feature dim
D_HID = 18      # hidden dim inside each MLP

# Covers the double-buffered lane-padded (tile, 12) x block (~512 B/row in VMEM)
# plus the (18, tile) f32 intermediates at tile=16384 (~23 MiB), with headroom,
# while staying well under v7x's 64 MiB physical VMEM.
VMEM_LIMIT_BYTES = 40 * 1024 * 1024


def _round_up(n, m):
    return ((n + m - 1) // m) * m


def mlp_list_kernel(x_ref, w1_ref, wmid_ref, wlast_ref, bias_ref, o_ref):
    hi = jax.lax.Precision.HIGHEST
    f32 = jnp.float32

    # x block is native batch-major (TB, 12); torch.chunk(x, 2, dim=1)[0] is a
    # static in-kernel lane slice.
    x_half = x_ref[:, :D_IN]                          # (TB, 6)
    b = bias_ref[...]                                 # (18, 4) column-packed biases

    # Stage 1:  h = relu(W1a @ x_half^T + b1a)  -> feature-major (18, TB)
    # (transposed-RHS contraction: no materialized transpose of x).
    h = jax.lax.dot_general(w1_ref[...], x_half,
                            dimension_numbers=(((1,), (1,)), ((), ())),
                            preferred_element_type=f32, precision=hi)
    h = jnp.maximum(h + b[:, 0:1], 0.0)

    # Stage 2 (fused W1b @ W2a):  h = relu(M_ab @ h + c_ab)
    h = jax.lax.dot_general(wmid_ref[0], h,
                            dimension_numbers=(((1,), (0,)), ((), ())),
                            preferred_element_type=f32, precision=hi)
    h = jnp.maximum(h + b[:, 1:2], 0.0)

    # Stage 3 (fused W1c @ W2b):  h = relu(M_bc @ h + c_bc)
    h = jax.lax.dot_general(wmid_ref[1], h,
                            dimension_numbers=(((1,), (0,)), ((), ())),
                            preferred_element_type=f32, precision=hi)
    h = jnp.maximum(h + b[:, 2:3], 0.0)

    # Stage 4:  out = W2c @ h + (b2c + 1)   ("+ ones_like(x)" folded into bias)
    out = jax.lax.dot_general(wlast_ref[...], h,
                              dimension_numbers=(((1,), (0,)), ((), ())),
                              preferred_element_type=f32, precision=hi)
    o_ref[...] = (out + b[0:D_IN, 3:4]).astype(o_ref.dtype)   # lane-dense store


def prepare_fused_params(params):
    """Fold the 3 MLPs' 12 parameters into 4 packed, feature-major arrays.

    params[i] = (w1, b1, w2, b2) with shapes (6,18), (1,18), (18,6), (1,6)
    stored for the 'x @ W' convention.  Returns:
      w1    : (18, 6)      h = relu(w1 @ x_half^T + bias[:, 0])
      wmid  : (2, 18, 18)  h = relu(wmid[k] @ h + bias[:, k+1])
      wlast : (6, 18)      y = wlast @ h + bias[:6, 3]   (+1 already folded)
      bias  : (18, 4)      column-packed biases
    """
    hi = jax.lax.Precision.HIGHEST  # exact f32 for the offline fold
    (w1a, b1a, w2a, b2a), (w1b, b1b, w2b, b2b), (w1c, b1c, w2c, b2c) = params
    f32 = jnp.float32

    A1 = w1a.T.astype(f32)                                            # (18, 6)
    c1 = b1a.reshape(-1).astype(f32)                                  # (18,)

    M_ab = jnp.dot(w1b.T, w2a.T, precision=hi).astype(f32)            # (18, 18)
    c_ab = (jnp.dot(w1b.T, b2a.reshape(-1), precision=hi)
            + b1b.reshape(-1)).astype(f32)                            # (18,)

    M_bc = jnp.dot(w1c.T, w2b.T, precision=hi).astype(f32)            # (18, 18)
    c_bc = (jnp.dot(w1c.T, b2b.reshape(-1), precision=hi)
            + b1c.reshape(-1)).astype(f32)                            # (18,)

    A4 = w2c.T.astype(f32)                                            # (6, 18)
    c4 = (b2c.reshape(-1) + 1.0).astype(f32)                          # (6,)

    wmid = jnp.stack([M_ab, M_bc])                                    # (2, 18, 18)
    bias = jnp.zeros((D_HID, 4), f32)
    bias = bias.at[:, 0].set(c1).at[:, 1].set(c_ab).at[:, 2].set(c_bc)
    bias = bias.at[:D_IN, 3].set(c4)
    return A1, wmid, A4, bias


@functools.partial(jax.jit, static_argnames=("tile_b", "out_batch_major"))
def mlp_list_forward(x, fused, tile_b=16384, out_batch_major=True):
    """x: (B, 2*D_IN).  fused: prepare_fused_params(params).

    Returns (B, D_IN) by default; pass out_batch_major=False to get the
    kernel-native lane-dense (D_IN, B) and skip the output transpose when the
    consumer can take feature-major data.
    """
    w1, wmid, wlast, bias = fused
    B = x.shape[0]
    assert x.shape[1] == 2 * D_IN, x.shape   # chunk(...,2)[0] assumes even width
    x = x.astype(jnp.float32)

    # Balanced batch tiling: tiles are multiples of 128 (output lane dim), the
    # grid divides the padded batch exactly, and padding never exceeds 128 rows
    # per tile (jnp.pad is skipped whenever B already divides the tiling).
    # VMEM note: the (tile, 12) f32 input block is lane-padded to 128 in VMEM
    # (~512 B/row); with double buffering plus (18, tile) f32 intermediates the
    # footprint is ~1.3 KiB per batch row, so tile=16384 stays ~23 MiB.
    # tile_b is a static arg — sweep 8192..32768 per chip generation.
    tile_b = max(128, (tile_b // 128) * 128)
    b128 = _round_up(B, 128)
    n_tiles = pl.cdiv(b128, tile_b)
    tile_eff = 128 * pl.cdiv(b128 // 128, n_tiles)   # <= tile_b, multiple of 128
    b_pad = tile_eff * n_tiles
    if b_pad != B:
        x = jnp.pad(x, ((0, b_pad - B), (0, 0)))

    out_t = pl.pallas_call(
        mlp_list_kernel,
        out_shape=jax.ShapeDtypeStruct((D_IN, b_pad), jnp.float32),
        grid=(n_tiles,),
        in_specs=[
            pl.BlockSpec((tile_eff, 2 * D_IN), lambda i: (i, 0)),   # x tile, batch-major
            pl.BlockSpec(w1.shape, lambda i: (0, 0)),               # resident weights
            pl.BlockSpec(wmid.shape, lambda i: (0, 0, 0)),
            pl.BlockSpec(wlast.shape, lambda i: (0, 0)),
            pl.BlockSpec(bias.shape, lambda i: (0, 0)),
        ],
        out_specs=pl.BlockSpec((D_IN, tile_eff), lambda i: (0, i)),  # lane-dense
        compiler_params=pltpu.CompilerParams(
            dimension_semantics=("parallel",),   # shards batch tiles across TCs on v7x
            vmem_limit_bytes=VMEM_LIMIT_BYTES),
    )(x, w1, wmid, wlast, bias)

    out_t = out_t[:, :B]
    return out_t.T if out_batch_major else out_t


def init_params(key):
    """Deterministic synthetic parameters matching nn.Linear shapes."""
    params = []
    for _ in range(NUM_MLPS):
        k1, k2, k3, k4, key = jax.random.split(key, 5)
        # stored as (in, out) so the reference does x @ W
        w1 = jax.random.normal(k1, (D_IN, D_HID), jnp.float32) * 0.3
        b1 = jax.random.normal(k2, (1, D_HID), jnp.float32) * 0.1
        w2 = jax.random.normal(k3, (D_HID, D_IN), jnp.float32) * 0.3
        b2 = jax.random.normal(k4, (1, D_IN), jnp.float32) * 0.1
        params.append((w1, b1, w2, b2))
    return params


def reference_forward(x, params):
    """Pure-JAX reference of the PyTorch forward, for correctness check."""
    h = x[:, : x.shape[1] // 2]
    for (w1, b1, w2, b2) in params:
        h = jnp.maximum(h @ w1 + b1, 0.0) @ w2 + b2
    return h + 1.0


if __name__ == "__main__":
    key = jax.random.PRNGKey(0)
    kx, kp = jax.random.split(key)

    B = 8
    x = jax.random.normal(kx, (B, 2 * D_IN), jnp.float32)
    params = init_params(kp)
    fused = prepare_fused_params(params)

    out = mlp_list_forward(x, fused)
    out = jax.block_until_ready(out)

    ref = reference_forward(x, params)
    assert out.shape == (B, D_IN), out.shape
    max_err = jnp.max(jnp.abs(out - ref))
    assert jnp.allclose(out, ref, atol=1e-4, rtol=1e-4), f"max err {max_err}"

    print("KERNEL_OK")
</pallas_src>

<mosaic_0001>
module attributes {stable_mosaic.version = 11 : i64} {
  func.func @mlp_list_kernel(%arg0: i32, %arg1: memref<128x12xf32, #tpu.memory_space<vmem>>, %arg2: memref<18x6xf32, #tpu.memory_space<vmem>>, %arg3: memref<2x18x18xf32, #tpu.memory_space<vmem>>, %arg4: memref<6x18xf32, #tpu.memory_space<vmem>>, %arg5: memref<18x4xf32, #tpu.memory_space<vmem>>, %arg6: memref<6x128xf32, #tpu.memory_space<vmem>>) attributes {dimension_semantics = [#tpu.dimension_semantics<parallel>], iteration_bounds = array<i64: 1>, scalar_prefetch = 0 : i64, scratch_operands = 0 : i64, tpu.core_type = #tpu.core_type<tc>, window_params = [{transform_indices = @transform_0, window_bounds = array<i64: 128, 12>}, {pipeline_mode = #tpu.pipeline_mode<synchronous>, transform_indices = @transform_1, window_bounds = array<i64: 18, 6>}, {pipeline_mode = #tpu.pipeline_mode<synchronous>, transform_indices = @transform_2, window_bounds = array<i64: 2, 18, 18>}, {pipeline_mode = #tpu.pipeline_mode<synchronous>, transform_indices = @transform_3, window_bounds = array<i64: 6, 18>}, {pipeline_mode = #tpu.pipeline_mode<synchronous>, transform_indices = @transform_4, window_bounds = array<i64: 18, 4>}, {transform_indices = @transform_5, window_bounds = array<i64: 6, 128>}]} {
    %c0 = arith.constant 0 : index
    %c0_0 = arith.constant 0 : index
    %0 = vector.load %arg1[%c0, %c0_0] : memref<128x12xf32, #tpu.memory_space<vmem>>, vector<128x6xf32>
    %c0_1 = arith.constant 0 : index
    %c0_2 = arith.constant 0 : index
    %1 = vector.load %arg5[%c0_1, %c0_2] : memref<18x4xf32, #tpu.memory_space<vmem>>, vector<18x4xf32>
    %c0_3 = arith.constant 0 : index
    %c0_4 = arith.constant 0 : index
    %2 = vector.load %arg2[%c0_3, %c0_4] : memref<18x6xf32, #tpu.memory_space<vmem>>, vector<18x6xf32>
    %cst = arith.constant dense<0.000000e+00> : vector<18x128xf32>
    %3 = tpu.matmul %2, %0, %cst {dimension_numbers = #tpu.dot_dimension_numbers<[1], [1], [0], [0], [0, 0, 1, 0], [], []>, precision = #tpu.contract_precision<fp32>} : vector<18x6xf32>, vector<128x6xf32>, vector<18x128xf32> -> vector<18x128xf32>
    %4 = vector.extract_strided_slice %1 {offsets = [0, 0], sizes = [18, 1], strides = [1, 1]} : vector<18x4xf32> to vector<18x1xf32>
    %5 = vector.broadcast %4 : vector<18x1xf32> to vector<18x128xf32>
    %6 = arith.addf %3, %5 : vector<18x128xf32>
    %cst_5 = arith.constant 0.000000e+00 : f32
    %7 = vector.broadcast %cst_5 : f32 to vector<18x128xf32>
    %8 = arith.maximumf %6, %7 : vector<18x128xf32>
    %c0_6 = arith.constant 0 : index
    %c0_7 = arith.constant 0 : index
    %c0_8 = arith.constant 0 : index
    %9 = vector.load %arg3[%c0_6, %c0_7, %c0_8] : memref<2x18x18xf32, #tpu.memory_space<vmem>>, vector<1x18x18xf32>
    %10 = vector.shape_cast %9 : vector<1x18x18xf32> to vector<18x18xf32>
    %cst_9 = arith.constant dense<0.000000e+00> : vector<18x128xf32>
    %11 = tpu.matmul %10, %8, %cst_9 {dimension_numbers = #tpu.dot_dimension_numbers<[1], [0], [0], [1], [0, 0, 1, 1], [], []>, precision = #tpu.contract_precision<fp32>} : vector<18x18xf32>, vector<18x128xf32>, vector<18x128xf32> -> vector<18x128xf32>
    %12 = vector.extract_strided_slice %1 {offsets = [0, 1], sizes = [18, 1], strides = [1, 1]} : vector<18x4xf32> to vector<18x1xf32>
    %13 = vector.broadcast %12 : vector<18x1xf32> to vector<18x128xf32>
    %14 = arith.addf %11, %13 : vector<18x128xf32>
    %cst_10 = arith.constant 0.000000e+00 : f32
    %15 = vector.broadcast %cst_10 : f32 to vector<18x128xf32>
    %16 = arith.maximumf %14, %15 : vector<18x128xf32>
    %c1 = arith.constant 1 : index
    %c0_11 = arith.constant 0 : index
    %c0_12 = arith.constant 0 : index
    %17 = vector.load %arg3[%c1, %c0_11, %c0_12] : memref<2x18x18xf32, #tpu.memory_space<vmem>>, vector<1x18x18xf32>
    %18 = vector.shape_cast %17 : vector<1x18x18xf32> to vector<18x18xf32>
    %cst_13 = arith.constant dense<0.000000e+00> : vector<18x128xf32>
    %19 = tpu.matmul %18, %16, %cst_13 {dimension_numbers = #tpu.dot_dimension_numbers<[1], [0], [0], [1], [0, 0, 1, 1], [], []>, precision = #tpu.contract_precision<fp32>} : vector<18x18xf32>, vector<18x128xf32>, vector<18x128xf32> -> vector<18x128xf32>
    %20 = vector.extract_strided_slice %1 {offsets = [0, 2], sizes = [18, 1], strides = [1, 1]} : vector<18x4xf32> to vector<18x1xf32>
    %21 = vector.broadcast %20 : vector<18x1xf32> to vector<18x128xf32>
    %22 = arith.addf %19, %21 : vector<18x128xf32>
    %cst_14 = arith.constant 0.000000e+00 : f32
    %23 = vector.broadcast %cst_14 : f32 to vector<18x128xf32>
    %24 = arith.maximumf %22, %23 : vector<18x128xf32>
    %c0_15 = arith.constant 0 : index
    %c0_16 = arith.constant 0 : index
    %25 = vector.load %arg4[%c0_15, %c0_16] : memref<6x18xf32, #tpu.memory_space<vmem>>, vector<6x18xf32>
    %cst_17 = arith.constant dense<0.000000e+00> : vector<6x128xf32>
    %26 = tpu.matmul %25, %24, %cst_17 {dimension_numbers = #tpu.dot_dimension_numbers<[1], [0], [0], [1], [0, 0, 1, 1], [], []>, precision = #tpu.contract_precision<fp32>} : vector<6x18xf32>, vector<18x128xf32>, vector<6x128xf32> -> vector<6x128xf32>
    %27 = vector.extract_strided_slice %1 {offsets = [0, 3], sizes = [6, 1], strides = [1, 1]} : vector<18x4xf32> to vector<6x1xf32>
    %28 = vector.broadcast %27 : vector<6x1xf32> to vector<6x128xf32>
    %29 = arith.addf %26, %28 : vector<6x128xf32>
    %c0_18 = arith.constant 0 : index
    %c0_19 = arith.constant 0 : index
    %30 = vector.load %arg6[%c0_18, %c0_19] : memref<6x128xf32, #tpu.memory_space<vmem>>, vector<6x128xf32>
    tpu.vector_store %arg6[%c0_18, %c0_19], %29 {strides = array<i32>} : memref<6x128xf32, #tpu.memory_space<vmem>>, vector<6x128xf32>,
    return
  }
  func.func @transform_0(%arg0: i32) -> (i32, i32) {
    %c0_i32 = arith.constant 0 : i32
    %c0_i32_0 = arith.constant 0 : i32
    return %arg0, %c0_i32 : i32, i32
  }
  func.func @transform_1(%arg0: i32) -> (i32, i32) {
    %c0_i32 = arith.constant 0 : i32
    %c0_i32_0 = arith.constant 0 : i32
    %c0_i32_1 = arith.constant 0 : i32
    return %c0_i32, %c0_i32_0 : i32, i32
  }
  func.func @transform_2(%arg0: i32) -> (i32, i32, i32) {
    %c0_i32 = arith.constant 0 : i32
    %c0_i32_0 = arith.constant 0 : i32
    %c0_i32_1 = arith.constant 0 : i32
    %c0_i32_2 = arith.constant 0 : i32
    return %c0_i32, %c0_i32_0, %c0_i32_1 : i32, i32, i32
  }
  func.func @transform_3(%arg0: i32) -> (i32, i32) {
    %c0_i32 = arith.constant 0 : i32
    %c0_i32_0 = arith.constant 0 : i32
    %c0_i32_1 = arith.constant 0 : i32
    return %c0_i32, %c0_i32_0 : i32, i32
  }
  func.func @transform_4(%arg0: i32) -> (i32, i32) {
    %c0_i32 = arith.constant 0 : i32
    %c0_i32_0 = arith.constant 0 : i32
    %c0_i32_1 = arith.constant 0 : i32
    return %c0_i32, %c0_i32_0 : i32, i32
  }
  func.func @transform_5(%arg0: i32) -> (i32, i32) {
    %c0_i32 = arith.constant 0 : i32
    %c0_i32_0 = arith.constant 0 : i32
    return %c0_i32, %arg0 : i32, i32
  }
}

</mosaic_0001>

<llo_original>
// kernel: mlp_list_forward.1
$region0: #{mlp_list_forward.1}
  #allocation0 [shape = 'u32[]', space=smem, size = 0x4, offset = 0x4, fixed_abs, tag = 'smem constant byte address 0x4 - core index']
  #allocation1 [shape = 'u32[144,128]{1,0:T(1,128)}', space=vmem, size = 0x12000, scoped, tag = 'internal scratch']
  %s0 = inlined_call_operand.vmem [shape: f32[128,12], index: 0, kind: input, shape index: {}]
  %s1 = inlined_call_operand.vmem [shape: f32[18,6], index: 1, kind: input, shape index: {}]
  %s2 = inlined_call_operand.vmem [shape: f32[2,18,18], index: 2, kind: input, shape index: {}]
  %s3 = inlined_call_operand.vmem [shape: f32[6,18], index: 3, kind: input, shape index: {}]
  %s4 = inlined_call_operand.vmem [shape: f32[18,4], index: 4, kind: input, shape index: {}]
  %s5 = inlined_call_operand.vmem [shape: f32[6,128], index: 5, kind: output, shape index: {}]
  %s6 = sld [smem:[#allocation0]]
  $region30: #{mlp_list_forward.1} parent=0
    _
  %s8 = ssub.s32 1, %s6
  %s9 = scalar_select 0, %s8, %s6
  // Predicated region
  $region2: #{mlp_list_forward.1} parent=0 // pred_check
    _
  $region3: #{mlp_list_forward.1} parent=0 // pred_check_branch
    %11 = sbr.rel (0) target = $region5
  $region4: #{mlp_list_forward.1} parent=0 // pred_region
    _
  $region5: #{mlp_list_forward.1} parent=0 // pred_fallthru
    _
  // Predicated region
  $region6: #{mlp_list_forward.1} parent=0 // pred_check
    _
  $region7: #{mlp_list_forward.1} parent=0 // pred_check_branch
    %13 = sbr.rel (0) target = $region9
  $region8: #{mlp_list_forward.1} parent=0 // pred_region
    _
  $region9: #{mlp_list_forward.1} parent=0 // pred_fallthru
    _
  // Predicated region
  $region10: #{mlp_list_forward.1} parent=0 // pred_check
    _
  $region11: #{mlp_list_forward.1} parent=0 // pred_check_branch
    %15 = sbr.rel (0) target = $region13
  $region12: #{mlp_list_forward.1} parent=0 // pred_region
    _
  $region13: #{mlp_list_forward.1} parent=0 // pred_fallthru
    _
  // Predicated region
  $region14: #{mlp_list_forward.1} parent=0 // pred_check
    _
  $region15: #{mlp_list_forward.1} parent=0 // pred_check_branch
    %17 = sbr.rel (0) target = $region17
  $region16: #{mlp_list_forward.1} parent=0 // pred_region
    _
  $region17: #{mlp_list_forward.1} parent=0 // pred_fallthru
    _
  // Predicated region
  $region18: #{mlp_list_forward.1} parent=0 // pred_check
    _
  $region19: #{mlp_list_forward.1} parent=0 // pred_check_branch
    %19 = sbr.rel (0) target = $region21
  $region20: #{mlp_list_forward.1} parent=0 // pred_region
    _
  $region21: #{mlp_list_forward.1} parent=0 // pred_fallthru
    _
  %v20 = vld [vmem:[%s0] sm:$0xff]
  %v21 = vld [vmem:[%s0 + $0x8] sm:$0xff]
  %v22 = vld [vmem:[%s0 + $0x10] sm:$0xff]
  %v23 = vld [vmem:[%s0 + $0x18] sm:$0xff]
  %v24 = vld [vmem:[%s0 + $0x20] sm:$0xff]
  %v25 = vld [vmem:[%s0 + $0x28] sm:$0xff]
  %v26 = vld [vmem:[%s0 + $0x30] sm:$0xff]
  %v27 = vld [vmem:[%s0 + $0x38] sm:$0xff]
  %v28 = vld [vmem:[%s0 + $0x40] sm:$0xff]
  %v29 = vld [vmem:[%s0 + $0x48] sm:$0xff]
  %v30 = vld [vmem:[%s0 + $0x50] sm:$0xff]
  %v31 = vld [vmem:[%s0 + $0x58] sm:$0xff]
  %v32 = vld [vmem:[%s0 + $0x60] sm:$0xff]
  %v33 = vld [vmem:[%s0 + $0x68] sm:$0xff]
  %v34 = vld [vmem:[%s0 + $0x70] sm:$0xff]
  %v35 = vld [vmem:[%s0 + $0x78] sm:$0xff]
  %v36 = vld [vmem:[%s4] sm:$0xff]
  %v37 = vld [vmem:[%s4 + $0x8] sm:$0xff]
  %v38 = vld [vmem:[%s4 + $0x10] sm:$0x3]
  %v39 = vld [vmem:[%s1] sm:$0xff]
  %v40 = vld [vmem:[%s1 + $0x8] sm:$0xff]
  %v41 = vld [vmem:[%s1 + $0x10] sm:$0x3]
  %43 = vset.pattern.permute.xlu0 0
  %44 = vperm.xlu0 %43, %v36
  %v45 = vpop.permute.xlu0 %44
  %48 = vset.pattern.permute.xlu0 0
  %49 = vperm.xlu0 %48, %v37
  %v50 = vpop.permute.xlu0 %49
  %53 = vset.pattern.permute.xlu0 0
  %54 = vperm.xlu0 %53, %v38
  %v55 = vpop.permute.xlu0 %54
  %vm57 = vcmask 48128
  %v59 = vsel %vm57, %v39, 0
  %v62 = vsel %vm57, %v40, 0
  %v65 = vsel %vm57, %v41, 0
  %v68 = vsel %vm57, %v20, 0
  %v71 = vsel %vm57, %v21, 0
  %v74 = vsel %vm57, %v22, 0
  %v77 = vsel %vm57, %v23, 0
  %v80 = vsel %vm57, %v24, 0
  %v83 = vsel %vm57, %v25, 0
  %v86 = vsel %vm57, %v26, 0
  %v89 = vsel %vm57, %v27, 0
  %v92 = vsel %vm57, %v28, 0
  %v95 = vsel %vm57, %v29, 0
  %v98 = vsel %vm57, %v30, 0
  %v101 = vsel %vm57, %v31, 0
  %v104 = vsel %vm57, %v32, 0
  %v107 = vsel %vm57, %v33, 0
  %v110 = vsel %vm57, %v34, 0
  %v113 = vsel %vm57, %v35, 0
  %115 = vmatprep.subr.mxu0 0.0
  %v116 = vand.u32 %v113, 4294901760
  %117 = vmatpush1.xpose.msra.mxu0 %v116
  %118 = vmatprep.subr.mxu0 0.0
  %v119 = vand.u32 %v110, 4294901760
  %120 = vmatpush1.xpose.msra.mxu0 %v119
  %121 = vmatprep.subr.mxu0 0.0
  %v122 = vand.u32 %v107, 4294901760
  %123 = vmatpush1.xpose.msra.mxu0 %v122
  %124 = vmatprep.subr.mxu0 0.0
  %v125 = vand.u32 %v104, 4294901760
  %126 = vmatpush1.xpose.msra.mxu0 %v125
  %127 = vmatprep.subr.mxu0 0.0
  %v128 = vand.u32 %v101, 4294901760
  %129 = vmatpush1.xpose.msra.mxu0 %v128
  %130 = vmatprep.subr.mxu0 0.0
  %v131 = vand.u32 %v98, 4294901760
  %132 = vmatpush1.xpose.msra.mxu0 %v131
  %133 = vmatprep.subr.mxu0 0.0
  %v134 = vand.u32 %v95, 4294901760
  %135 = vmatpush1.xpose.msra.mxu0 %v134
  %136 = vmatprep.subr.mxu0 0.0
  %v137 = vand.u32 %v92, 4294901760
  %138 = vmatpush1.xpose.msra.mxu0 %v137
  %139 = vmatprep.subr.mxu0 0.0
  %v140 = vand.u32 %v89, 4294901760
  %141 = vmatpush1.xpose.msra.mxu0 %v140
  %142 = vmatprep.subr.mxu0 0.0
  %v143 = vand.u32 %v86, 4294901760
  %144 = vmatpush1.xpose.msra.mxu0 %v143
  %145 = vmatprep.subr.mxu0 0.0
  %v146 = vand.u32 %v83, 4294901760
  %147 = vmatpush1.xpose.msra.mxu0 %v146
  %148 = vmatprep.subr.mxu0 0.0
  %v149 = vand.u32 %v80, 4294901760
  %150 = vmatpush1.xpose.msra.mxu0 %v149
  %151 = vmatprep.subr.mxu0 0.0
  %v152 = vand.u32 %v77, 4294901760
  %153 = vmatpush1.xpose.msra.mxu0 %v152
  %154 = vmatprep.subr.mxu0 0.0
  %v155 = vand.u32 %v74, 4294901760
  %156 = vmatpush1.xpose.msra.mxu0 %v155
  %157 = vmatprep.subr.mxu0 0.0
  %v158 = vand.u32 %v71, 4294901760
  %159 = vmatpush1.xpose.msra.mxu0 %v158
  %160 = vmatprep.subr.mxu0 0.0
  %v161 = vand.u32 %v68, 4294901760
  %162 = vmatpush1.xpose.msra.mxu0 %v161
  %163 = vmatprep.subr.mxu0 0.0
  %164 = vmatpush2.xpose.msra.mxu0 0.0
  %165 = vmatprep.subr.mxu0 0.0
  %166 = vmatpush2.xpose.msra.mxu0 0.0
  %167 = vmatprep.subr.mxu0 0.0
  %168 = vmatpush2.xpose.msra.mxu0 0.0
  %169 = vmatprep.subr.mxu0 0.0
  %170 = vmatpush2.xpose.msra.mxu0 0.0
  %171 = vmatprep.subr.mxu0 0.0
  %172 = vmatpush2.xpose.msra.mxu0 0.0
  %173 = vmatprep.subr.mxu0 0.0
  %174 = vmatpush2.xpose.msra.mxu0 0.0
  %175 = vmatprep.subr.mxu0 0.0
  %176 = vmatpush2.xpose.msra.mxu0 0.0
  %177 = vmatprep.subr.mxu0 0.0
  %178 = vmatpush2.xpose.msra.mxu0 0.0
  %179 = vmatprep.subr.mxu0 0.0
  %180 = vmatpush2.xpose.msra.mxu0 0.0
  %181 = vmatprep.subr.mxu0 0.0
  %182 = vmatpush2.xpose.msra.mxu0 0.0
  %183 = vmatprep.subr.mxu0 0.0
  %184 = vmatpush2.xpose.msra.mxu0 0.0
  %185 = vmatprep.subr.mxu0 0.0
  %186 = vmatpush2.xpose.msra.mxu0 0.0
  %187 = vmatprep.subr.mxu0 0.0
  %188 = vmatpush2.xpose.msra.mxu0 0.0
  %189 = vmatprep.subr.mxu0 0.0
  %190 = vmatpush2.xpose.msra.mxu0 0.0
  %191 = vmatprep.subr.mxu0 0.0
  %192 = vmatpush2.xpose.msra.mxu0 0.0
  %193 = vmatprep.subr.mxu0 0.0
  %194 = vmatpush2.xpose.msra.mxu0 0.0
  %195 = vmatprep.mubr.f32.mxu0 0.0
  %v196 = vand.u32 %v59, 4294901760
  %v197 = vsub.f32 %v59, %v196
  %v198 = vand.u32 %v197, 4294901760
  %v199 = vsub.f32 %v197, %v198
  %v200 = vand.u32 %v199, 4294901760
  %201 = vmatmul.mubr.f32.gmra.mxu0 %v200
  %v202 = vpop.f32.mrf.mxu0
  %v203 = vadd.f32 %v45, %v202
  %v204 = vpop.f32.mrf.mxu0
  %205 = vmatprep.mubr.f32.mxu0 0.0
  %v206 = vand.u32 %v62, 4294901760
  %v207 = vsub.f32 %v62, %v206
  %v208 = vand.u32 %v207, 4294901760
  %v209 = vsub.f32 %v207, %v208
  %v210 = vand.u32 %v209, 4294901760
  %211 = vmatmul.mubr.f32.gmra.mxu0 %v210
  %v212 = vpop.f32.mrf.mxu0
  %v213 = vadd.f32 %v50, %v212
  %v214 = vpop.f32.mrf.mxu0
  %215 = vmatprep.mubr.f32.mxu0 0.0
  %v216 = vand.u32 %v65, 4294901760
  %v217 = vsub.f32 %v65, %v216
  %v218 = vand.u32 %v217, 4294901760
  %v219 = vsub.f32 %v217, %v218
  %v220 = vand.u32 %v219, 4294901760
  %221 = vmatmul.mubr.f32.gmra.mxu0 %v220
  %v222 = vpop.f32.mrf.mxu0
  %v223 = vadd.f32 %v55, %v222
  %v224 = vpop.f32.mrf.mxu0
  %225 = vdwg.mxu0
  %226 = vmatprep.subr.mxu0 0.0
  %v227 = vand.u32 %v113, 4294901760
  %v228 = vsub.f32 %v113, %v227
  %v229 = vand.u32 %v228, 4294901760
  %v230 = vsub.f32 %v228, %v229
  %v231 = vand.u32 %v230, 4294901760
  %232 = vmatpush1.xpose.msra.mxu0 %v231
  %233 = vmatprep.subr.mxu0 0.0
  %v234 = vand.u32 %v110, 4294901760
  %v235 = vsub.f32 %v110, %v234
  %v236 = vand.u32 %v235, 4294901760
  %v237 = vsub.f32 %v235, %v236
  %v238 = vand.u32 %v237, 4294901760
  %239 = vmatpush1.xpose.msra.mxu0 %v238
  %240 = vmatprep.subr.mxu0 0.0
  %v241 = vand.u32 %v107, 4294901760
  %v242 = vsub.f32 %v107, %v241
  %v243 = vand.u32 %v242, 4294901760
  %v244 = vsub.f32 %v242, %v243
  %v245 = vand.u32 %v244, 4294901760
  %246 = vmatpush1.xpose.msra.mxu0 %v245
  %247 = vmatprep.subr.mxu0 0.0
  %v248 = vand.u32 %v104, 4294901760
  %v249 = vsub.f32 %v104, %v248
  %v250 = vand.u32 %v249, 4294901760
  %v251 = vsub.f32 %v249, %v250
  %v252 = vand.u32 %v251, 4294901760
  %253 = vmatpush1.xpose.msra.mxu0 %v252
  %254 = vmatprep.subr.mxu0 0.0
  %v255 = vand.u32 %v101, 4294901760
  %v256 = vsub.f32 %v101, %v255
  %v257 = vand.u32 %v256, 4294901760
  %v258 = vsub.f32 %v256, %v257
  %v259 = vand.u32 %v258, 4294901760
  %260 = vmatpush1.xpose.msra.mxu0 %v259
  %261 = vmatprep.subr.mxu0 0.0
  %v262 = vand.u32 %v98, 4294901760
  %v263 = vsub.f32 %v98, %v262
  %v264 = vand.u32 %v263, 4294901760
  %v265 = vsub.f32 %v263, %v264
  %v266 = vand.u32 %v265, 4294901760
  %267 = vmatpush1.xpose.msra.mxu0 %v266
  %268 = vmatprep.subr.mxu0 0.0
  %v269 = vand.u32 %v95, 4294901760
  %v270 = vsub.f32 %v95, %v269
  %v271 = vand.u32 %v270, 4294901760
  %v272 = vsub.f32 %v270, %v271
  %v273 = vand.u32 %v272, 4294901760
  %274 = vmatpush1.xpose.msra.mxu0 %v273
  %275 = vmatprep.subr.mxu0 0.0
  %v276 = vand.u32 %v92, 4294901760
  %v277 = vsub.f32 %v92, %v276
  %v278 = vand.u32 %v277, 4294901760
  %v279 = vsub.f32 %v277, %v278
  %v280 = vand.u32 %v279, 4294901760
  %281 = vmatpush1.xpose.msra.mxu0 %v280
  %282 = vmatprep.subr.mxu0 0.0
  %v283 = vand.u32 %v89, 4294901760
  %v284 = vsub.f32 %v89, %v283
  %v285 = vand.u32 %v284, 4294901760
  %v286 = vsub.f32 %v284, %v285
  %v287 = vand.u32 %v286, 4294901760
  %288 = vmatpush1.xpose.msra.mxu0 %v287
  %289 = vmatprep.subr.mxu0 0.0
  %v290 = vand.u32 %v86, 4294901760
  %v291 = vsub.f32 %v86, %v290
  %v292 = vand.u32 %v291, 4294901760
  %v293 = vsub.f32 %v291, %v292
  %v294 = vand.u32 %v293, 4294901760
  %295 = vmatpush1.xpose.msra.mxu0 %v294
  %296 = vmatprep.subr.mxu0 0.0
  %v297 = vand.u32 %v83, 4294901760
  %v298 = vsub.f32 %v83, %v297
  %v299 = vand.u32 %v298, 4294901760
  %v300 = vsub.f32 %v298, %v299
  %v301 = vand.u32 %v300, 4294901760
  %302 = vmatpush1.xpose.msra.mxu0 %v301
  %303 = vmatprep.subr.mxu0 0.0
  %v304 = vand.u32 %v80, 4294901760
  %v305 = vsub.f32 %v80, %v304
  %v306 = vand.u32 %v305, 4294901760
  %v307 = vsub.f32 %v305, %v306
  %v308 = vand.u32 %v307, 4294901760
  %309 = vmatpush1.xpose.msra.mxu0 %v308
  %310 = vmatprep.subr.mxu0 0.0
  %v311 = vand.u32 %v77, 4294901760
  %v312 = vsub.f32 %v77, %v311
  %v313 = vand.u32 %v312, 4294901760
  %v314 = vsub.f32 %v312, %v313
  %v315 = vand.u32 %v314, 4294901760
  %316 = vmatpush1.xpose.msra.mxu0 %v315
  %317 = vmatprep.subr.mxu0 0.0
  %v318 = vand.u32 %v74, 4294901760
  %v319 = vsub.f32 %v74, %v318
  %v320 = vand.u32 %v319, 4294901760
  %v321 = vsub.f32 %v319, %v320
  %v322 = vand.u32 %v321, 4294901760
  %323 = vmatpush1.xpose.msra.mxu0 %v322
  %324 = vmatprep.subr.mxu0 0.0
  %v325 = vand.u32 %v71, 4294901760
  %v326 = vsub.f32 %v71, %v325
  %v327 = vand.u32 %v326, 4294901760
  %v328 = vsub.f32 %v326, %v327
  %v329 = vand.u32 %v328, 4294901760
  %330 = vmatpush1.xpose.msra.mxu0 %v329
  %331 = vmatprep.subr.mxu0 0.0
  %v332 = vand.u32 %v68, 4294901760
  %v333 = vsub.f32 %v68, %v332
  %v334 = vand.u32 %v333, 4294901760
  %v335 = vsub.f32 %v333, %v334
  %v336 = vand.u32 %v335, 4294901760
  %337 = vmatpush1.xpose.msra.mxu0 %v336
  %338 = vmatprep.subr.mxu0 0.0
  %339 = vmatpush2.xpose.msra.mxu0 0.0
  %340 = vmatprep.subr.mxu0 0.0
  %341 = vmatpush2.xpose.msra.mxu0 0.0
  %342 = vmatprep.subr.mxu0 0.0
  %343 = vmatpush2.xpose.msra.mxu0 0.0
  %344 = vmatprep.subr.mxu0 0.0
  %345 = vmatpush2.xpose.msra.mxu0 0.0
  %346 = vmatprep.subr.mxu0 0.0
  %347 = vmatpush2.xpose.msra.mxu0 0.0
  %348 = vmatprep.subr.mxu0 0.0
  %349 = vmatpush2.xpose.msra.mxu0 0.0
  %350 = vmatprep.subr.mxu0 0.0
  %351 = vmatpush2.xpose.msra.mxu0 0.0
  %352 = vmatprep.subr.mxu0 0.0
  %353 = vmatpush2.xpose.msra.mxu0 0.0
  %354 = vmatprep.subr.mxu0 0.0
  %355 = vmatpush2.xpose.msra.mxu0 0.0
  %356 = vmatprep.subr.mxu0 0.0
  %357 = vmatpush2.xpose.msra.mxu0 0.0
  %358 = vmatprep.subr.mxu0 0.0
  %359 = vmatpush2.xpose.msra.mxu0 0.0
  %360 = vmatprep.subr.mxu0 0.0
  %361 = vmatpush2.xpose.msra.mxu0 0.0
  %362 = vmatprep.subr.mxu0 0.0
  %363 = vmatpush2.xpose.msra.mxu0 0.0
  %364 = vmatprep.subr.mxu0 0.0
  %365 = vmatpush2.xpose.msra.mxu0 0.0
  %366 = vmatprep.subr.mxu0 0.0
  %367 = vmatpush2.xpose.msra.mxu0 0.0
  %368 = vmatprep.subr.mxu0 0.0
  %369 = vmatpush2.xpose.msra.mxu0 0.0
  %370 = vmatprep.mubr.f32.mxu0 0.0
  %v371 = vand.u32 %v59, 4294901760
  %372 = vmatmul.mubr.f32.gmra.mxu0 %v371
  %v373 = vpop.f32.mrf.mxu0
  %v374 = vadd.f32 %v203, %v373
  %v375 = vpop.f32.mrf.mxu0
  %376 = vmatprep.mubr.f32.mxu0 0.0
  %v377 = vand.u32 %v62, 4294901760
  %378 = vmatmul.mubr.f32.gmra.mxu0 %v377
  %v379 = vpop.f32.mrf.mxu0
  %v380 = vadd.f32 %v213, %v379
  %v381 = vpop.f32.mrf.mxu0
  %382 = vmatprep.mubr.f32.mxu0 0.0
  %v383 = vand.u32 %v65, 4294901760
  %384 = vmatmul.mubr.f32.gmra.mxu0 %v383
  %v385 = vpop.f32.mrf.mxu0
  %v386 = vadd.f32 %v223, %v385
  %v387 = vpop.f32.mrf.mxu0
  %388 = vdwg.mxu0
  %389 = vmatprep.subr.mxu0 0.0
  %v390 = vand.u32 %v113, 4294901760
  %v391 = vsub.f32 %v113, %v390
  %392 = vmatpush1.xpose.msra.mxu0 %v391
  %393 = vmatprep.subr.mxu0 0.0
  %v394 = vand.u32 %v110, 4294901760
  %v395 = vsub.f32 %v110, %v394
  %396 = vmatpush1.xpose.msra.mxu0 %v395
  %397 = vmatprep.subr.mxu0 0.0
  %v398 = vand.u32 %v107, 4294901760
  %v399 = vsub.f32 %v107, %v398
  %400 = vmatpush1.xpose.msra.mxu0 %v399
  %401 = vmatprep.subr.mxu0 0.0
  %v402 = vand.u32 %v104, 4294901760
  %v403 = vsub.f32 %v104, %v402
  %404 = vmatpush1.xpose.msra.mxu0 %v403
  %405 = vmatprep.subr.mxu0 0.0
  %v406 = vand.u32 %v101, 4294901760
  %v407 = vsub.f32 %v101, %v406
  %408 = vmatpush1.xpose.msra.mxu0 %v407
  %409 = vmatprep.subr.mxu0 0.0
  %v410 = vand.u32 %v98, 4294901760
  %v411 = vsub.f32 %v98, %v410
  %412 = vmatpush1.xpose.msra.mxu0 %v411
  %413 = vmatprep.subr.mxu0 0.0
  %v414 = vand.u32 %v95, 4294901760
  %v415 = vsub.f32 %v95, %v414
  %416 = vmatpush1.xpose.msra.mxu0 %v415
  %417 = vmatprep.subr.mxu0 0.0
  %v418 = vand.u32 %v92, 4294901760
  %v419 = vsub.f32 %v92, %v418
  %420 = vmatpush1.xpose.msra.mxu0 %v419
  %421 = vmatprep.subr.mxu0 0.0
  %v422 = vand.u32 %v89, 4294901760
  %v423 = vsub.f32 %v89, %v422
  %424 = vmatpush1.xpose.msra.mxu0 %v423
  %425 = vmatprep.subr.mxu0 0.0
  %v426 = vand.u32 %v86, 4294901760
  %v427 = vsub.f32 %v86, %v426
  %428 = vmatpush1.xpose.msra.mxu0 %v427
  %429 = vmatprep.subr.mxu0 0.0
  %v430 = vand.u32 %v83, 4294901760
  %v431 = vsub.f32 %v83, %v430
  %432 = vmatpush1.xpose.msra.mxu0 %v431
  %433 = vmatprep.subr.mxu0 0.0
  %v434 = vand.u32 %v80, 4294901760
  %v435 = vsub.f32 %v80, %v434
  %436 = vmatpush1.xpose.msra.mxu0 %v435
  %437 = vmatprep.subr.mxu0 0.0
  %v438 = vand.u32 %v77, 4294901760
  %v439 = vsub.f32 %v77, %v438
  %440 = vmatpush1.xpose.msra.mxu0 %v439
  %441 = vmatprep.subr.mxu0 0.0
  %v442 = vand.u32 %v74, 4294901760
  %v443 = vsub.f32 %v74, %v442
  %444 = vmatpush1.xpose.msra.mxu0 %v443
  %445 = vmatprep.subr.mxu0 0.0
  %v446 = vand.u32 %v71, 4294901760
  %v447 = vsub.f32 %v71, %v446
  %448 = vmatpush1.xpose.msra.mxu0 %v447
  %449 = vmatprep.subr.mxu0 0.0
  %v450 = vand.u32 %v68, 4294901760
  %v451 = vsub.f32 %v68, %v450
  %452 = vmatpush1.xpose.msra.mxu0 %v451
  %453 = vmatprep.subr.mxu0 0.0
  %454 = vmatpush2.xpose.msra.mxu0 0.0
  %455 = vmatprep.subr.mxu0 0.0
  %456 = vmatpush2.xpose.msra.mxu0 0.0
  %457 = vmatprep.subr.mxu0 0.0
  %458 = vmatpush2.xpose.msra.mxu0 0.0
  %459 = vmatprep.subr.mxu0 0.0
  %460 = vmatpush2.xpose.msra.mxu0 0.0
  %461 = vmatprep.subr.mxu0 0.0
  %462 = vmatpush2.xpose.msra.mxu0 0.0
  %463 = vmatprep.subr.mxu0 0.0
  %464 = vmatpush2.xpose.msra.mxu0 0.0
  %465 = vmatprep.subr.mxu0 0.0
  %466 = vmatpush2.xpose.msra.mxu0 0.0
  %467 = vmatprep.subr.mxu0 0.0
  %468 = vmatpush2.xpose.msra.mxu0 0.0
  %469 = vmatprep.subr.mxu0 0.0
  %470 = vmatpush2.xpose.msra.mxu0 0.0
  %471 = vmatprep.subr.mxu0 0.0
  %472 = vmatpush2.xpose.msra.mxu0 0.0
  %473 = vmatprep.subr.mxu0 0.0
  %474 = vmatpush2.xpose.msra.mxu0 0.0
  %475 = vmatprep.subr.mxu0 0.0
  %476 = vmatpush2.xpose.msra.mxu0 0.0
  %477 = vmatprep.subr.mxu0 0.0
  %478 = vmatpush2.xpose.msra.mxu0 0.0
  %479 = vmatprep.subr.mxu0 0.0
  %480 = vmatpush2.xpose.msra.mxu0 0.0
  %481 = vmatprep.subr.mxu0 0.0
  %482 = vmatpush2.xpose.msra.mxu0 0.0
  %483 = vmatprep.subr.mxu0 0.0
  %484 = vmatpush2.xpose.msra.mxu0 0.0
  %485 = vmatprep.mubr.f32.mxu0 0.0
  %v486 = vand.u32 %v59, 4294901760
  %v487 = vsub.f32 %v59, %v486
  %488 = vmatmul.mubr.f32.gmra.mxu0 %v487
  %v489 = vpop.f32.mrf.mxu0
  %v490 = vadd.f32 %v374, %v489
  %v491 = vpop.f32.mrf.mxu0
  %492 = vmatprep.mubr.f32.mxu0 0.0
  %v493 = vand.u32 %v62, 4294901760
  %v494 = vsub.f32 %v62, %v493
  %495 = vmatmul.mubr.f32.gmra.mxu0 %v494
  %v496 = vpop.f32.mrf.mxu0
  %v497 = vadd.f32 %v380, %v496
  %v498 = vpop.f32.mrf.mxu0
  %499 = vmatprep.mubr.f32.mxu0 0.0
  %v500 = vand.u32 %v65, 4294901760
  %v501 = vsub.f32 %v65, %v500
  %502 = vmatmul.mubr.f32.gmra.mxu0 %v501
  %v503 = vpop.f32.mrf.mxu0
  %v504 = vadd.f32 %v386, %v503
  %v505 = vpop.f32.mrf.mxu0
  %506 = vdwg.mxu0
  %507 = vmatprep.subr.mxu0 0.0
  %v508 = vand.u32 %v113, 4294901760
  %509 = vmatpush1.xpose.msra.mxu0 %v508
  %510 = vmatprep.subr.mxu0 0.0
  %v511 = vand.u32 %v110, 4294901760
  %512 = vmatpush1.xpose.msra.mxu0 %v511
  %513 = vmatprep.subr.mxu0 0.0
  %v514 = vand.u32 %v107, 4294901760
  %515 = vmatpush1.xpose.msra.mxu0 %v514
  %516 = vmatprep.subr.mxu0 0.0
  %v517 = vand.u32 %v104, 4294901760
  %518 = vmatpush1.xpose.msra.mxu0 %v517
  %519 = vmatprep.subr.mxu0 0.0
  %v520 = vand.u32 %v101, 4294901760
  %521 = vmatpush1.xpose.msra.mxu0 %v520
  %522 = vmatprep.subr.mxu0 0.0
  %v523 = vand.u32 %v98, 4294901760
  %524 = vmatpush1.xpose.msra.mxu0 %v523
  %525 = vmatprep.subr.mxu0 0.0
  %v526 = vand.u32 %v95, 4294901760
  %527 = vmatpush1.xpose.msra.mxu0 %v526
  %528 = vmatprep.subr.mxu0 0.0
  %v529 = vand.u32 %v92, 4294901760
  %530 = vmatpush1.xpose.msra.mxu0 %v529
  %531 = vmatprep.subr.mxu0 0.0
  %v532 = vand.u32 %v89, 4294901760
  %533 = vmatpush1.xpose.msra.mxu0 %v532
  %534 = vmatprep.subr.mxu0 0.0
  %v535 = vand.u32 %v86, 4294901760
  %536 = vmatpush1.xpose.msra.mxu0 %v535
  %537 = vmatprep.subr.mxu0 0.0
  %v538 = vand.u32 %v83, 4294901760
  %539 = vmatpush1.xpose.msra.mxu0 %v538
  %540 = vmatprep.subr.mxu0 0.0
  %v541 = vand.u32 %v80, 4294901760
  %542 = vmatpush1.xpose.msra.mxu0 %v541
  %543 = vmatprep.subr.mxu0 0.0
  %v544 = vand.u32 %v77, 4294901760
  %545 = vmatpush1.xpose.msra.mxu0 %v544
  %546 = vmatprep.subr.mxu0 0.0
  %v547 = vand.u32 %v74, 4294901760
  %548 = vmatpush1.xpose.msra.mxu0 %v547
  %549 = vmatprep.subr.mxu0 0.0
  %v550 = vand.u32 %v71, 4294901760
  %551 = vmatpush1.xpose.msra.mxu0 %v550
  %552 = vmatprep.subr.mxu0 0.0
  %v553 = vand.u32 %v68, 4294901760
  %554 = vmatpush1.xpose.msra.mxu0 %v553
  %555 = vmatprep.subr.mxu0 0.0
  %556 = vmatpush2.xpose.msra.mxu0 0.0
  %557 = vmatprep.subr.mxu0 0.0
  %558 = vmatpush2.xpose.msra.mxu0 0.0
  %559 = vmatprep.subr.mxu0 0.0
  %560 = vmatpush2.xpose.msra.mxu0 0.0
  %561 = vmatprep.subr.mxu0 0.0
  %562 = vmatpush2.xpose.msra.mxu0 0.0
  %563 = vmatprep.subr.mxu0 0.0
  %564 = vmatpush2.xpose.msra.mxu0 0.0
  %565 = vmatprep.subr.mxu0 0.0
  %566 = vmatpush2.xpose.msra.mxu0 0.0
  %567 = vmatprep.subr.mxu0 0.0
  %568 = vmatpush2.xpose.msra.mxu0 0.0
  %569 = vmatprep.subr.mxu0 0.0
  %570 = vmatpush2.xpose.msra.mxu0 0.0
  %571 = vmatprep.subr.mxu0 0.0
  %572 = vmatpush2.xpose.msra.mxu0 0.0
  %573 = vmatprep.subr.mxu0 0.0
  %574 = vmatpush2.xpose.msra.mxu0 0.0
  %575 = vmatprep.subr.mxu0 0.0
  %576 = vmatpush2.xpose.msra.mxu0 0.0
  %577 = vmatprep.subr.mxu0 0.0
  %578 = vmatpush2.xpose.msra.mxu0 0.0
  %579 = vmatprep.subr.mxu0 0.0
  %580 = vmatpush2.xpose.msra.mxu0 0.0
  %581 = vmatprep.subr.mxu0 0.0
  %582 = vmatpush2.xpose.msra.mxu0 0.0
  %583 = vmatprep.subr.mxu0 0.0
  %584 = vmatpush2.xpose.msra.mxu0 0.0
  %585 = vmatprep.subr.mxu0 0.0
  %586 = vmatpush2.xpose.msra.mxu0 0.0
  %587 = vmatprep.mubr.f32.mxu0 0.0
  %v588 = vand.u32 %v59, 4294901760
  %v589 = vsub.f32 %v59, %v588
  %v590 = vand.u32 %v589, 4294901760
  %591 = vmatmul.mubr.f32.gmra.mxu0 %v590
  %v592 = vpop.f32.mrf.mxu0
  %v593 = vadd.f32 %v490, %v592
  %v594 = vpop.f32.mrf.mxu0
  %595 = vmatprep.mubr.f32.mxu0 0.0
  %v596 = vand.u32 %v62, 4294901760
  %v597 = vsub.f32 %v62, %v596
  %v598 = vand.u32 %v597, 4294901760
  %599 = vmatmul.mubr.f32.gmra.mxu0 %v598
  %v600 = vpop.f32.mrf.mxu0
  %v601 = vadd.f32 %v497, %v600
  %v602 = vpop.f32.mrf.mxu0
  %603 = vmatprep.mubr.f32.mxu0 0.0
  %v604 = vand.u32 %v65, 4294901760
  %v605 = vsub.f32 %v65, %v604
  %v606 = vand.u32 %v605, 4294901760
  %607 = vmatmul.mubr.f32.gmra.mxu0 %v606
  %v608 = vpop.f32.mrf.mxu0
  %v609 = vadd.f32 %v504, %v608
  %v610 = vpop.f32.mrf.mxu0
  %611 = vdwg.mxu0
  %612 = vmatprep.subr.mxu0 0.0
  %v613 = vand.u32 %v113, 4294901760
  %v614 = vsub.f32 %v113, %v613
  %v615 = vand.u32 %v614, 4294901760
  %616 = vmatpush1.xpose.msra.mxu0 %v615
  %617 = vmatprep.subr.mxu0 0.0
  %v618 = vand.u32 %v110, 4294901760
  %v619 = vsub.f32 %v110, %v618
  %v620 = vand.u32 %v619, 4294901760
  %621 = vmatpush1.xpose.msra.mxu0 %v620
  %622 = vmatprep.subr.mxu0 0.0
  %v623 = vand.u32 %v107, 4294901760
  %v624 = vsub.f32 %v107, %v623
  %v625 = vand.u32 %v624, 4294901760
  %626 = vmatpush1.xpose.msra.mxu0 %v625
  %627 = vmatprep.subr.mxu0 0.0
  %v628 = vand.u32 %v104, 4294901760
  %v629 = vsub.f32 %v104, %v628
  %v630 = vand.u32 %v629, 4294901760
  %631 = vmatpush1.xpose.msra.mxu0 %v630
  %632 = vmatprep.subr.mxu0 0.0
  %v633 = vand.u32 %v101, 4294901760
  %v634 = vsub.f32 %v101, %v633
  %v635 = vand.u32 %v634, 4294901760
  %636 = vmatpush1.xpose.msra.mxu0 %v635
  %637 = vmatprep.subr.mxu0 0.0
  %v638 = vand.u32 %v98, 4294901760
  %v639 = vsub.f32 %v98, %v638
  %v640 = vand.u32 %v639, 4294901760
  %641 = vmatpush1.xpose.msra.mxu0 %v640
  %642 = vmatprep.subr.mxu0 0.0
  %v643 = vand.u32 %v95, 4294901760
  %v644 = vsub.f32 %v95, %v643
  %v645 = vand.u32 %v644, 4294901760
  %646 = vmatpush1.xpose.msra.mxu0 %v645
  %647 = vmatprep.subr.mxu0 0.0
  %v648 = vand.u32 %v92, 4294901760
  %v649 = vsub.f32 %v92, %v648
  %v650 = vand.u32 %v649, 4294901760
  %651 = vmatpush1.xpose.msra.mxu0 %v650
  %652 = vmatprep.subr.mxu0 0.0
  %v653 = vand.u32 %v89, 4294901760
  %v654 = vsub.f32 %v89, %v653
  %v655 = vand.u32 %v654, 4294901760
  %656 = vmatpush1.xpose.msra.mxu0 %v655
  %657 = vmatprep.subr.mxu0 0.0
  %v658 = vand.u32 %v86, 4294901760
  %v659 = vsub.f32 %v86, %v658
  %v660 = vand.u32 %v659, 4294901760
  %661 = vmatpush1.xpose.msra.mxu0 %v660
  %662 = vmatprep.subr.mxu0 0.0
  %v663 = vand.u32 %v83, 4294901760
  %v664 = vsub.f32 %v83, %v663
  %v665 = vand.u32 %v664, 4294901760
  %666 = vmatpush1.xpose.msra.mxu0 %v665
  %667 = vmatprep.subr.mxu0 0.0
  %v668 = vand.u32 %v80, 4294901760
  %v669 = vsub.f32 %v80, %v668
  %v670 = vand.u32 %v669, 4294901760
  %671 = vmatpush1.xpose.msra.mxu0 %v670
  %672 = vmatprep.subr.mxu0 0.0
  %v673 = vand.u32 %v77, 4294901760
  %v674 = vsub.f32 %v77, %v673
  %v675 = vand.u32 %v674, 4294901760
  %676 = vmatpush1.xpose.msra.mxu0 %v675
  %677 = vmatprep.subr.mxu0 0.0
  %v678 = vand.u32 %v74, 4294901760
  %v679 = vsub.f32 %v74, %v678
  %v680 = vand.u32 %v679, 4294901760
  %681 = vmatpush1.xpose.msra.mxu0 %v680
  %682 = vmatprep.subr.mxu0 0.0
  %v683 = vand.u32 %v71, 4294901760
  %v684 = vsub.f32 %v71, %v683
  %v685 = vand.u32 %v684, 4294901760
  %686 = vmatpush1.xpose.msra.mxu0 %v685
  %687 = vmatprep.subr.mxu0 0.0
  %v688 = vand.u32 %v68, 4294901760
  %v689 = vsub.f32 %v68, %v688
  %v690 = vand.u32 %v689, 4294901760
  %691 = vmatpush1.xpose.msra.mxu0 %v690
  %692 = vmatprep.subr.mxu0 0.0
  %693 = vmatpush2.xpose.msra.mxu0 0.0
  %694 = vmatprep.subr.mxu0 0.0
  %695 = vmatpush2.xpose.msra.mxu0 0.0
  %696 = vmatprep.subr.mxu0 0.0
  %697 = vmatpush2.xpose.msra.mxu0 0.0
  %698 = vmatprep.subr.mxu0 0.0
  %699 = vmatpush2.xpose.msra.mxu0 0.0
  %700 = vmatprep.subr.mxu0 0.0
  %701 = vmatpush2.xpose.msra.mxu0 0.0
  %702 = vmatprep.subr.mxu0 0.0
  %703 = vmatpush2.xpose.msra.mxu0 0.0
  %704 = vmatprep.subr.mxu0 0.0
  %705 = vmatpush2.xpose.msra.mxu0 0.0
  %706 = vmatprep.subr.mxu0 0.0
  %707 = vmatpush2.xpose.msra.mxu0 0.0
  %708 = vmatprep.subr.mxu0 0.0
  %709 = vmatpush2.xpose.msra.mxu0 0.0
  %710 = vmatprep.subr.mxu0 0.0
  %711 = vmatpush2.xpose.msra.mxu0 0.0
  %712 = vmatprep.subr.mxu0 0.0
  %713 = vmatpush2.xpose.msra.mxu0 0.0
  %714 = vmatprep.subr.mxu0 0.0
  %715 = vmatpush2.xpose.msra.mxu0 0.0
  %716 = vmatprep.subr.mxu0 0.0
  %717 = vmatpush2.xpose.msra.mxu0 0.0
  %718 = vmatprep.subr.mxu0 0.0
  %719 = vmatpush2.xpose.msra.mxu0 0.0
  %720 = vmatprep.subr.mxu0 0.0
  %721 = vmatpush2.xpose.msra.mxu0 0.0
  %722 = vmatprep.subr.mxu0 0.0
  %723 = vmatpush2.xpose.msra.mxu0 0.0
  %724 = vmatprep.mubr.f32.mxu0 0.0
  %v725 = vand.u32 %v59, 4294901760
  %726 = vmatmul.mubr.f32.gmra.mxu0 %v725
  %v727 = vpop.f32.mrf.mxu0
  %v728 = vadd.f32 %v593, %v727
  %v729 = vpop.f32.mrf.mxu0
  %730 = vmatprep.mubr.f32.mxu0 0.0
  %v731 = vand.u32 %v62, 4294901760
  %732 = vmatmul.mubr.f32.gmra.mxu0 %v731
  %v733 = vpop.f32.mrf.mxu0
  %v734 = vadd.f32 %v601, %v733
  %v735 = vpop.f32.mrf.mxu0
  %736 = vmatprep.mubr.f32.mxu0 0.0
  %v737 = vand.u32 %v65, 4294901760
  %738 = vmatmul.mubr.f32.gmra.mxu0 %v737
  %v739 = vpop.f32.mrf.mxu0
  %v740 = vadd.f32 %v609, %v739
  %v741 = vpop.f32.mrf.mxu0
  %742 = vdwg.mxu0
  %743 = vmatprep.subr.mxu0 0.0
  %v744 = vand.u32 %v113, 4294901760
  %745 = vmatpush1.xpose.msra.mxu0 %v744
  %746 = vmatprep.subr.mxu0 0.0
  %v747 = vand.u32 %v110, 4294901760
  %748 = vmatpush1.xpose.msra.mxu0 %v747
  %749 = vmatprep.subr.mxu0 0.0
  %v750 = vand.u32 %v107, 4294901760
  %751 = vmatpush1.xpose.msra.mxu0 %v750
  %752 = vmatprep.subr.mxu0 0.0
  %v753 = vand.u32 %v104, 4294901760
  %754 = vmatpush1.xpose.msra.mxu0 %v753
  %755 = vmatprep.subr.mxu0 0.0
  %v756 = vand.u32 %v101, 4294901760
  %757 = vmatpush1.xpose.msra.mxu0 %v756
  %758 = vmatprep.subr.mxu0 0.0
  %v759 = vand.u32 %v98, 4294901760
  %760 = vmatpush1.xpose.msra.mxu0 %v759
  %761 = vmatprep.subr.mxu0 0.0
  %v762 = vand.u32 %v95, 4294901760
  %763 = vmatpush1.xpose.msra.mxu0 %v762
  %764 = vmatprep.subr.mxu0 0.0
  %v765 = vand.u32 %v92, 4294901760
  %766 = vmatpush1.xpose.msra.mxu0 %v765
  %767 = vmatprep.subr.mxu0 0.0
  %v768 = vand.u32 %v89, 4294901760
  %769 = vmatpush1.xpose.msra.mxu0 %v768
  %770 = vmatprep.subr.mxu0 0.0
  %v771 = vand.u32 %v86, 4294901760
  %772 = vmatpush1.xpose.msra.mxu0 %v771
  %773 = vmatprep.subr.mxu0 0.0
  %v774 = vand.u32 %v83, 4294901760
  %775 = vmatpush1.xpose.msra.mxu0 %v774
  %776 = vmatprep.subr.mxu0 0.0
  %v777 = vand.u32 %v80, 4294901760
  %778 = vmatpush1.xpose.msra.mxu0 %v777
  %779 = vmatprep.subr.mxu0 0.0
  %v780 = vand.u32 %v77, 4294901760
  %781 = vmatpush1.xpose.msra.mxu0 %v780
  %782 = vmatprep.subr.mxu0 0.0
  %v783 = vand.u32 %v74, 4294901760
  %784 = vmatpush1.xpose.msra.mxu0 %v783
  %785 = vmatprep.subr.mxu0 0.0
  %v786 = vand.u32 %v71, 4294901760
  %787 = vmatpush1.xpose.msra.mxu0 %v786
  %788 = vmatprep.subr.mxu0 0.0
  %v789 = vand.u32 %v68, 4294901760
  %790 = vmatpush1.xpose.msra.mxu0 %v789
  %791 = vmatprep.subr.mxu0 0.0
  %792 = vmatpush2.xpose.msra.mxu0 0.0
  %793 = vmatprep.subr.mxu0 0.0
  %794 = vmatpush2.xpose.msra.mxu0 0.0
  %795 = vmatprep.subr.mxu0 0.0
  %796 = vmatpush2.xpose.msra.mxu0 0.0
  %797 = vmatprep.subr.mxu0 0.0
  %798 = vmatpush2.xpose.msra.mxu0 0.0
  %799 = vmatprep.subr.mxu0 0.0
  %800 = vmatpush2.xpose.msra.mxu0 0.0
  %801 = vmatprep.subr.mxu0 0.0
  %802 = vmatpush2.xpose.msra.mxu0 0.0
  %803 = vmatprep.subr.mxu0 0.0
  %804 = vmatpush2.xpose.msra.mxu0 0.0
  %805 = vmatprep.subr.mxu0 0.0
  %806 = vmatpush2.xpose.msra.mxu0 0.0
  %807 = vmatprep.subr.mxu0 0.0
  %808 = vmatpush2.xpose.msra.mxu0 0.0
  %809 = vmatprep.subr.mxu0 0.0
  %810 = vmatpush2.xpose.msra.mxu0 0.0
  %811 = vmatprep.subr.mxu0 0.0
  %812 = vmatpush2.xpose.msra.mxu0 0.0
  %813 = vmatprep.subr.mxu0 0.0
  %814 = vmatpush2.xpose.msra.mxu0 0.0
  %815 = vmatprep.subr.mxu0 0.0
  %816 = vmatpush2.xpose.msra.mxu0 0.0
  %817 = vmatprep.subr.mxu0 0.0
  %818 = vmatpush2.xpose.msra.mxu0 0.0
  %819 = vmatprep.subr.mxu0 0.0
  %820 = vmatpush2.xpose.msra.mxu0 0.0
  %821 = vmatprep.subr.mxu0 0.0
  %822 = vmatpush2.xpose.msra.mxu0 0.0
  %823 = vmatprep.mubr.f32.mxu0 0.0
  %v824 = vand.u32 %v59, 4294901760
  %825 = vmatmul.mubr.f32.gmra.mxu0 %v824
  %v826 = vpop.f32.mrf.mxu0
  %v827 = vadd.f32 %v728, %v826
  %v828 = vpop.f32.mrf.mxu0
  %829 = vmatprep.mubr.f32.mxu0 0.0
  %v830 = vand.u32 %v62, 4294901760
  %831 = vmatmul.mubr.f32.gmra.mxu0 %v830
  %v832 = vpop.f32.mrf.mxu0
  %v833 = vadd.f32 %v734, %v832
  %v834 = vpop.f32.mrf.mxu0
  %835 = vmatprep.mubr.f32.mxu0 0.0
  %v836 = vand.u32 %v65, 4294901760
  %837 = vmatmul.mubr.f32.gmra.mxu0 %v836
  %v838 = vpop.f32.mrf.mxu0
  %v839 = vadd.f32 %v740, %v838
  %v840 = vpop.f32.mrf.mxu0
  %841 = vdwg.mxu0
  %v842 = vmax.f32 %v827, 0.0
  %v843 = vmax.f32 %v833, 0.0
  %v844 = vmax.f32 %v839, 0.0
  %v845 = vld [vmem:[%s2] sm:$0xff]
  %v846 = vld [vmem:[%s2 + $0x8] sm:$0xff]
  %v847 = vld [vmem:[%s2 + $0x10] sm:$0x3]
  %848 = vset.pattern.permute.xlu0 1
  %849 = vperm.xlu0 %848, %v36
  %v850 = vpop.permute.xlu0 %849
  %852 = vset.pattern.permute.xlu0 1
  %853 = vperm.xlu0 %852, %v37
  %v854 = vpop.permute.xlu0 %853
  %856 = vset.pattern.permute.xlu0 1
  %857 = vperm.xlu0 %856, %v38
  %v858 = vpop.permute.xlu0 %857
  %vm860 = vcmask 146432
  %v862 = vsel %vm860, %v845, 0
  %v865 = vsel %vm860, %v846, 0
  %v868 = vsel %vm860, %v847, 0
  %vm870 = vcmask 1041408
  %v872 = vsel %vm870, %v844, 0
  %874 = vmatprep.subr.mxu0 0.0
  %875 = vmatpush1.msra.mxu0 0.0
  %876 = vmatprep.subr.mxu0 0.0
  %877 = vmatpush1.msra.mxu0 0.0
  %878 = vmatprep.subr.mxu0 0.0
  %879 = vmatpush1.msra.mxu0 0.0
  %880 = vmatprep.subr.mxu0 0.0
  %881 = vmatpush1.msra.mxu0 0.0
  %882 = vmatprep.subr.mxu0 0.0
  %883 = vmatpush1.msra.mxu0 0.0
  %884 = vmatprep.subr.mxu0 0.0
  %885 = vmatpush1.msra.mxu0 0.0
  %886 = vmatprep.subr.mxu0 0.0
  %887 = vmatpush1.msra.mxu0 0.0
  %888 = vmatprep.subr.mxu0 0.0
  %889 = vmatpush1.msra.mxu0 0.0
  %890 = vmatprep.subr.mxu0 0.0
  %891 = vmatpush1.msra.mxu0 0.0
  %892 = vmatprep.subr.mxu0 0.0
  %893 = vmatpush1.msra.mxu0 0.0
  %894 = vmatprep.subr.mxu0 0.0
  %895 = vmatpush1.msra.mxu0 0.0
  %896 = vmatprep.subr.mxu0 0.0
  %897 = vmatpush1.msra.mxu0 0.0
  %898 = vmatprep.subr.mxu0 0.0
  %899 = vmatpush1.msra.mxu0 0.0
  %900 = vmatprep.subr.mxu0 0.0
  %v901 = vand.u32 %v872, 4294901760
  %902 = vmatpush1.msra.mxu0 %v901
  %903 = vmatprep.subr.mxu0 0.0
  %v904 = vand.u32 %v843, 4294901760
  %905 = vmatpush1.msra.mxu0 %v904
  %906 = vmatprep.subr.mxu0 0.0
  %v907 = vand.u32 %v842, 4294901760
  %908 = vmatpush1.msra.mxu0 %v907
  %909 = vmatprep.subr.mxu0 0.0
  %910 = vmatpush2.msra.mxu0 0.0
  %911 = vmatprep.subr.mxu0 0.0
  %912 = vmatpush2.msra.mxu0 0.0
  %913 = vmatprep.subr.mxu0 0.0
  %914 = vmatpush2.msra.mxu0 0.0
  %915 = vmatprep.subr.mxu0 0.0
  %916 = vmatpush2.msra.mxu0 0.0
  %917 = vmatprep.subr.mxu0 0.0
  %918 = vmatpush2.msra.mxu0 0.0
  %919 = vmatprep.subr.mxu0 0.0
  %920 = vmatpush2.msra.mxu0 0.0
  %921 = vmatprep.subr.mxu0 0.0
  %922 = vmatpush2.msra.mxu0 0.0
  %923 = vmatprep.subr.mxu0 0.0
  %924 = vmatpush2.msra.mxu0 0.0
  %925 = vmatprep.subr.mxu0 0.0
  %926 = vmatpush2.msra.mxu0 0.0
  %927 = vmatprep.subr.mxu0 0.0
  %928 = vmatpush2.msra.mxu0 0.0
  %929 = vmatprep.subr.mxu0 0.0
  %930 = vmatpush2.msra.mxu0 0.0
  %931 = vmatprep.subr.mxu0 0.0
  %932 = vmatpush2.msra.mxu0 0.0
  %933 = vmatprep.subr.mxu0 0.0
  %934 = vmatpush2.msra.mxu0 0.0
  %935 = vmatprep.subr.mxu0 0.0
  %936 = vmatpush2.msra.mxu0 0.0
  %937 = vmatprep.subr.mxu0 0.0
  %938 = vmatpush2.msra.mxu0 0.0
  %939 = vmatprep.subr.mxu0 0.0
  %940 = vmatpush2.msra.mxu0 0.0
  %941 = vmatprep.mubr.f32.mxu0 0.0
  %v942 = vand.u32 %v862, 4294901760
  %v943 = vsub.f32 %v862, %v942
  %v944 = vand.u32 %v943, 4294901760
  %v945 = vsub.f32 %v943, %v944
  %v946 = vand.u32 %v945, 4294901760
  %947 = vmatmul.mubr.f32.gmra.mxu0 %v946
  %v948 = vpop.f32.mrf.mxu0
  %v949 = vadd.f32 %v850, %v948
  %v950 = vpop.f32.mrf.mxu0
  %951 = vmatprep.mubr.f32.mxu0 0.0
  %v952 = vand.u32 %v865, 4294901760
  %v953 = vsub.f32 %v865, %v952
  %v954 = vand.u32 %v953, 4294901760
  %v955 = vsub.f32 %v953, %v954
  %v956 = vand.u32 %v955, 4294901760
  %957 = vmatmul.mubr.f32.gmra.mxu0 %v956
  %v958 = vpop.f32.mrf.mxu0
  %v959 = vadd.f32 %v854, %v958
  %v960 = vpop.f32.mrf.mxu0
  %961 = vmatprep.mubr.f32.mxu0 0.0
  %v962 = vand.u32 %v868, 4294901760
  %v963 = vsub.f32 %v868, %v962
  %v964 = vand.u32 %v963, 4294901760
  %v965 = vsub.f32 %v963, %v964
  %v966 = vand.u32 %v965, 4294901760
  %967 = vmatmul.mubr.f32.gmra.mxu0 %v966
  %v968 = vpop.f32.mrf.mxu0
  %v969 = vadd.f32 %v858, %v968
  %v970 = vpop.f32.mrf.mxu0
  %971 = vdwg.mxu0
  %972 = vmatprep.subr.mxu0 0.0
  %973 = vmatpush1.msra.mxu0 0.0
  %974 = vmatprep.subr.mxu0 0.0
  %975 = vmatpush1.msra.mxu0 0.0
  %976 = vmatprep.subr.mxu0 0.0
  %977 = vmatpush1.msra.mxu0 0.0
  %978 = vmatprep.subr.mxu0 0.0
  %979 = vmatpush1.msra.mxu0 0.0
  %980 = vmatprep.subr.mxu0 0.0
  %981 = vmatpush1.msra.mxu0 0.0
  %982 = vmatprep.subr.mxu0 0.0
  %983 = vmatpush1.msra.mxu0 0.0
  %984 = vmatprep.subr.mxu0 0.0
  %985 = vmatpush1.msra.mxu0 0.0
  %986 = vmatprep.subr.mxu0 0.0
  %987 = vmatpush1.msra.mxu0 0.0
  %988 = vmatprep.subr.mxu0 0.0
  %989 = vmatpush1.msra.mxu0 0.0
  %990 = vmatprep.subr.mxu0 0.0
  %991 = vmatpush1.msra.mxu0 0.0
  %992 = vmatprep.subr.mxu0 0.0
  %993 = vmatpush1.msra.mxu0 0.0
  %994 = vmatprep.subr.mxu0 0.0
  %995 = vmatpush1.msra.mxu0 0.0
  %996 = vmatprep.subr.mxu0 0.0
  %997 = vmatpush1.msra.mxu0 0.0
  %998 = vmatprep.subr.mxu0 0.0
  %v999 = vand.u32 %v872, 4294901760
  %v1000 = vsub.f32 %v872, %v999
  %v1001 = vand.u32 %v1000, 4294901760
  %v1002 = vsub.f32 %v1000, %v1001
  %v1003 = vand.u32 %v1002, 4294901760
  %1004 = vmatpush1.msra.mxu0 %v1003
  %1005 = vmatprep.subr.mxu0 0.0
  %v1006 = vand.u32 %v843, 4294901760
  %v1007 = vsub.f32 %v843, %v1006
  %v1008 = vand.u32 %v1007, 4294901760
  %v1009 = vsub.f32 %v1007, %v1008
  %v1010 = vand.u32 %v1009, 4294901760
  %1011 = vmatpush1.msra.mxu0 %v1010
  %1012 = vmatprep.subr.mxu0 0.0
  %v1013 = vand.u32 %v842, 4294901760
  %v1014 = vsub.f32 %v842, %v1013
  %v1015 = vand.u32 %v1014, 4294901760
  %v1016 = vsub.f32 %v1014, %v1015
  %v1017 = vand.u32 %v1016, 4294901760
  %1018 = vmatpush1.msra.mxu0 %v1017
  %1019 = vmatprep.subr.mxu0 0.0
  %1020 = vmatpush2.msra.mxu0 0.0
  %1021 = vmatprep.subr.mxu0 0.0
  %1022 = vmatpush2.msra.mxu0 0.0
  %1023 = vmatprep.subr.mxu0 0.0
  %1024 = vmatpush2.msra.mxu0 0.0
  %1025 = vmatprep.subr.mxu0 0.0
  %1026 = vmatpush2.msra.mxu0 0.0
  %1027 = vmatprep.subr.mxu0 0.0
  %1028 = vmatpush2.msra.mxu0 0.0
  %1029 = vmatprep.subr.mxu0 0.0
  %1030 = vmatpush2.msra.mxu0 0.0
  %1031 = vmatprep.subr.mxu0 0.0
  %1032 = vmatpush2.msra.mxu0 0.0
  %1033 = vmatprep.subr.mxu0 0.0
  %1034 = vmatpush2.msra.mxu0 0.0
  %1035 = vmatprep.subr.mxu0 0.0
  %1036 = vmatpush2.msra.mxu0 0.0
  %1037 = vmatprep.subr.mxu0 0.0
  %1038 = vmatpush2.msra.mxu0 0.0
  %1039 = vmatprep.subr.mxu0 0.0
  %1040 = vmatpush2.msra.mxu0 0.0
  %1041 = vmatprep.subr.mxu0 0.0
  %1042 = vmatpush2.msra.mxu0 0.0
  %1043 = vmatprep.subr.mxu0 0.0
  %1044 = vmatpush2.msra.mxu0 0.0
  %1045 = vmatprep.subr.mxu0 0.0
  %1046 = vmatpush2.msra.mxu0 0.0
  %1047 = vmatprep.subr.mxu0 0.0
  %1048 = vmatpush2.msra.mxu0 0.0
  %1049 = vmatprep.subr.mxu0 0.0
  %1050 = vmatpush2.msra.mxu0 0.0
  %1051 = vmatprep.mubr.f32.mxu0 0.0
  %v1052 = vand.u32 %v862, 4294901760
  %1053 = vmatmul.mubr.f32.gmra.mxu0 %v1052
  %v1054 = vpop.f32.mrf.mxu0
  %v1055 = vadd.f32 %v949, %v1054
  %v1056 = vpop.f32.mrf.mxu0
  %1057 = vmatprep.mubr.f32.mxu0 0.0
  %v1058 = vand.u32 %v865, 4294901760
  %1059 = vmatmul.mubr.f32.gmra.mxu0 %v1058
  %v1060 = vpop.f32.mrf.mxu0
  %v1061 = vadd.f32 %v959, %v1060
  %v1062 = vpop.f32.mrf.mxu0
  %1063 = vmatprep.mubr.f32.mxu0 0.0
  %v1064 = vand.u32 %v868, 4294901760
  %1065 = vmatmul.mubr.f32.gmra.mxu0 %v1064
  %v1066 = vpop.f32.mrf.mxu0
  %v1067 = vadd.f32 %v969, %v1066
  %v1068 = vpop.f32.mrf.mxu0
  %1069 = vdwg.mxu0
  %1070 = vmatprep.subr.mxu0 0.0
  %1071 = vmatpush1.msra.mxu0 0.0
  %1072 = vmatprep.subr.mxu0 0.0
  %1073 = vmatpush1.msra.mxu0 0.0
  %1074 = vmatprep.subr.mxu0 0.0
  %1075 = vmatpush1.msra.mxu0 0.0
  %1076 = vmatprep.subr.mxu0 0.0
  %1077 = vmatpush1.msra.mxu0 0.0
  %1078 = vmatprep.subr.mxu0 0.0
  %1079 = vmatpush1.msra.mxu0 0.0
  %1080 = vmatprep.subr.mxu0 0.0
  %1081 = vmatpush1.msra.mxu0 0.0
  %1082 = vmatprep.subr.mxu0 0.0
  %1083 = vmatpush1.msra.mxu0 0.0
  %1084 = vmatprep.subr.mxu0 0.0
  %1085 = vmatpush1.msra.mxu0 0.0
  %1086 = vmatprep.subr.mxu0 0.0
  %1087 = vmatpush1.msra.mxu0 0.0
  %1088 = vmatprep.subr.mxu0 0.0
  %1089 = vmatpush1.msra.mxu0 0.0
  %1090 = vmatprep.subr.mxu0 0.0
  %1091 = vmatpush1.msra.mxu0 0.0
  %1092 = vmatprep.subr.mxu0 0.0
  %1093 = vmatpush1.msra.mxu0 0.0
  %1094 = vmatprep.subr.mxu0 0.0
  %1095 = vmatpush1.msra.mxu0 0.0
  %1096 = vmatprep.subr.mxu0 0.0
  %v1097 = vand.u32 %v872, 4294901760
  %v1098 = vsub.f32 %v872, %v1097
  %1099 = vmatpush1.msra.mxu0 %v1098
  %1100 = vmatprep.subr.mxu0 0.0
  %v1101 = vand.u32 %v843, 4294901760
  %v1102 = vsub.f32 %v843, %v1101
  %1103 = vmatpush1.msra.mxu0 %v1102
  %1104 = vmatprep.subr.mxu0 0.0
  %v1105 = vand.u32 %v842, 4294901760
  %v1106 = vsub.f32 %v842, %v1105
  %1107 = vmatpush1.msra.mxu0 %v1106
  %1108 = vmatprep.subr.mxu0 0.0
  %1109 = vmatpush2.msra.mxu0 0.0
  %1110 = vmatprep.subr.mxu0 0.0
  %1111 = vmatpush2.msra.mxu0 0.0
  %1112 = vmatprep.subr.mxu0 0.0
  %1113 = vmatpush2.msra.mxu0 0.0
  %1114 = vmatprep.subr.mxu0 0.0
  %1115 = vmatpush2.msra.mxu0 0.0
  %1116 = vmatprep.subr.mxu0 0.0
  %1117 = vmatpush2.msra.mxu0 0.0
  %1118 = vmatprep.subr.mxu0 0.0
  %1119 = vmatpush2.msra.mxu0 0.0
  %1120 = vmatprep.subr.mxu0 0.0
  %1121 = vmatpush2.msra.mxu0 0.0
  %1122 = vmatprep.subr.mxu0 0.0
  %1123 = vmatpush2.msra.mxu0 0.0
  %1124 = vmatprep.subr.mxu0 0.0
  %1125 = vmatpush2.msra.mxu0 0.0
  %1126 = vmatprep.subr.mxu0 0.0
  %1127 = vmatpush2.msra.mxu0 0.0
  %1128 = vmatprep.subr.mxu0 0.0
  %1129 = vmatpush2.msra.mxu0 0.0
  %1130 = vmatprep.subr.mxu0 0.0
  %1131 = vmatpush2.msra.mxu0 0.0
  %1132 = vmatprep.subr.mxu0 0.0
  %1133 = vmatpush2.msra.mxu0 0.0
  %1134 = vmatprep.subr.mxu0 0.0
  %1135 = vmatpush2.msra.mxu0 0.0
  %1136 = vmatprep.subr.mxu0 0.0
  %1137 = vmatpush2.msra.mxu0 0.0
  %1138 = vmatprep.subr.mxu0 0.0
  %1139 = vmatpush2.msra.mxu0 0.0
  %1140 = vmatprep.mubr.f32.mxu0 0.0
  %v1141 = vand.u32 %v862, 4294901760
  %v1142 = vsub.f32 %v862, %v1141
  %1143 = vmatmul.mubr.f32.gmra.mxu0 %v1142
  %v1144 = vpop.f32.mrf.mxu0
  %v1145 = vadd.f32 %v1055, %v1144
  %v1146 = vpop.f32.mrf.mxu0
  %1147 = vmatprep.mubr.f32.mxu0 0.0
  %v1148 = vand.u32 %v865, 4294901760
  %v1149 = vsub.f32 %v865, %v1148
  %1150 = vmatmul.mubr.f32.gmra.mxu0 %v1149
  %v1151 = vpop.f32.mrf.mxu0
  %v1152 = vadd.f32 %v1061, %v1151
  %v1153 = vpop.f32.mrf.mxu0
  %1154 = vmatprep.mubr.f32.mxu0 0.0
  %v1155 = vand.u32 %v868, 4294901760
  %v1156 = vsub.f32 %v868, %v1155
  %1157 = vmatmul.mubr.f32.gmra.mxu0 %v1156
  %v1158 = vpop.f32.mrf.mxu0
  %v1159 = vadd.f32 %v1067, %v1158
  %v1160 = vpop.f32.mrf.mxu0
  %1161 = vdwg.mxu0
  %1162 = vmatprep.subr.mxu0 0.0
  %1163 = vmatpush1.msra.mxu0 0.0
  %1164 = vmatprep.subr.mxu0 0.0
  %1165 = vmatpush1.msra.mxu0 0.0
  %1166 = vmatprep.subr.mxu0 0.0
  %1167 = vmatpush1.msra.mxu0 0.0
  %1168 = vmatprep.subr.mxu0 0.0
  %1169 = vmatpush1.msra.mxu0 0.0
  %1170 = vmatprep.subr.mxu0 0.0
  %1171 = vmatpush1.msra.mxu0 0.0
  %1172 = vmatprep.subr.mxu0 0.0
  %1173 = vmatpush1.msra.mxu0 0.0
  %1174 = vmatprep.subr.mxu0 0.0
  %1175 = vmatpush1.msra.mxu0 0.0
  %1176 = vmatprep.subr.mxu0 0.0
  %1177 = vmatpush1.msra.mxu0 0.0
  %1178 = vmatprep.subr.mxu0 0.0
  %1179 = vmatpush1.msra.mxu0 0.0
  %1180 = vmatprep.subr.mxu0 0.0
  %1181 = vmatpush1.msra.mxu0 0.0
  %1182 = vmatprep.subr.mxu0 0.0
  %1183 = vmatpush1.msra.mxu0 0.0
  %1184 = vmatprep.subr.mxu0 0.0
  %1185 = vmatpush1.msra.mxu0 0.0
  %1186 = vmatprep.subr.mxu0 0.0
  %1187 = vmatpush1.msra.mxu0 0.0
  %1188 = vmatprep.subr.mxu0 0.0
  %v1189 = vand.u32 %v872, 4294901760
  %1190 = vmatpush1.msra.mxu0 %v1189
  %1191 = vmatprep.subr.mxu0 0.0
  %v1192 = vand.u32 %v843, 4294901760
  %1193 = vmatpush1.msra.mxu0 %v1192
  %1194 = vmatprep.subr.mxu0 0.0
  %v1195 = vand.u32 %v842, 4294901760
  %1196 = vmatpush1.msra.mxu0 %v1195
  %1197 = vmatprep.subr.mxu0 0.0
  %1198 = vmatpush2.msra.mxu0 0.0
  %1199 = vmatprep.subr.mxu0 0.0
  %1200 = vmatpush2.msra.mxu0 0.0
  %1201 = vmatprep.subr.mxu0 0.0
  %1202 = vmatpush2.msra.mxu0 0.0
  %1203 = vmatprep.subr.mxu0 0.0
  %1204 = vmatpush2.msra.mxu0 0.0
  %1205 = vmatprep.subr.mxu0 0.0
  %1206 = vmatpush2.msra.mxu0 0.0
  %1207 = vmatprep.subr.mxu0 0.0
  %1208 = vmatpush2.msra.mxu0 0.0
  %1209 = vmatprep.subr.mxu0 0.0
  %1210 = vmatpush2.msra.mxu0 0.0
  %1211 = vmatprep.subr.mxu0 0.0
  %1212 = vmatpush2.msra.mxu0 0.0
  %1213 = vmatprep.subr.mxu0 0.0
  %1214 = vmatpush2.msra.mxu0 0.0
  %1215 = vmatprep.subr.mxu0 0.0
  %1216 = vmatpush2.msra.mxu0 0.0
  %1217 = vmatprep.subr.mxu0 0.0
  %1218 = vmatpush2.msra.mxu0 0.0
  %1219 = vmatprep.subr.mxu0 0.0
  %1220 = vmatpush2.msra.mxu0 0.0
  %1221 = vmatprep.subr.mxu0 0.0
  %1222 = vmatpush2.msra.mxu0 0.0
  %1223 = vmatprep.subr.mxu0 0.0
  %1224 = vmatpush2.msra.mxu0 0.0
  %1225 = vmatprep.subr.mxu0 0.0
  %1226 = vmatpush2.msra.mxu0 0.0
  %1227 = vmatprep.subr.mxu0 0.0
  %1228 = vmatpush2.msra.mxu0 0.0
  %1229 = vmatprep.mubr.f32.mxu0 0.0
  %v1230 = vand.u32 %v862, 4294901760
  %v1231 = vsub.f32 %v862, %v1230
  %v1232 = vand.u32 %v1231, 4294901760
  %1233 = vmatmul.mubr.f32.gmra.mxu0 %v1232
  %v1234 = vpop.f32.mrf.mxu0
  %v1235 = vadd.f32 %v1145, %v1234
  %v1236 = vpop.f32.mrf.mxu0
  %1237 = vmatprep.mubr.f32.mxu0 0.0
  %v1238 = vand.u32 %v865, 4294901760
  %v1239 = vsub.f32 %v865, %v1238
  %v1240 = vand.u32 %v1239, 4294901760
  %1241 = vmatmul.mubr.f32.gmra.mxu0 %v1240
  %v1242 = vpop.f32.mrf.mxu0
  %v1243 = vadd.f32 %v1152, %v1242
  %v1244 = vpop.f32.mrf.mxu0
  %1245 = vmatprep.mubr.f32.mxu0 0.0
  %v1246 = vand.u32 %v868, 4294901760
  %v1247 = vsub.f32 %v868, %v1246
  %v1248 = vand.u32 %v1247, 4294901760
  %1249 = vmatmul.mubr.f32.gmra.mxu0 %v1248
  %v1250 = vpop.f32.mrf.mxu0
  %v1251 = vadd.f32 %v1159, %v1250
  %v1252 = vpop.f32.mrf.mxu0
  %1253 = vdwg.mxu0
  %1254 = vmatprep.subr.mxu0 0.0
  %1255 = vmatpush1.msra.mxu0 0.0
  %1256 = vmatprep.subr.mxu0 0.0
  %1257 = vmatpush1.msra.mxu0 0.0
  %1258 = vmatprep.subr.mxu0 0.0
  %1259 = vmatpush1.msra.mxu0 0.0
  %1260 = vmatprep.subr.mxu0 0.0
  %1261 = vmatpush1.msra.mxu0 0.0
  %1262 = vmatprep.subr.mxu0 0.0
  %1263 = vmatpush1.msra.mxu0 0.0
  %1264 = vmatprep.subr.mxu0 0.0
  %1265 = vmatpush1.msra.mxu0 0.0
  %1266 = vmatprep.subr.mxu0 0.0
  %1267 = vmatpush1.msra.mxu0 0.0
  %1268 = vmatprep.subr.mxu0 0.0
  %1269 = vmatpush1.msra.mxu0 0.0
  %1270 = vmatprep.subr.mxu0 0.0
  %1271 = vmatpush1.msra.mxu0 0.0
  %1272 = vmatprep.subr.mxu0 0.0
  %1273 = vmatpush1.msra.mxu0 0.0
  %1274 = vmatprep.subr.mxu0 0.0
  %1275 = vmatpush1.msra.mxu0 0.0
  %1276 = vmatprep.subr.mxu0 0.0
  %1277 = vmatpush1.msra.mxu0 0.0
  %1278 = vmatprep.subr.mxu0 0.0
  %1279 = vmatpush1.msra.mxu0 0.0
  %1280 = vmatprep.subr.mxu0 0.0
  %v1281 = vand.u32 %v872, 4294901760
  %v1282 = vsub.f32 %v872, %v1281
  %v1283 = vand.u32 %v1282, 4294901760
  %1284 = vmatpush1.msra.mxu0 %v1283
  %1285 = vmatprep.subr.mxu0 0.0
  %v1286 = vand.u32 %v843, 4294901760
  %v1287 = vsub.f32 %v843, %v1286
  %v1288 = vand.u32 %v1287, 4294901760
  %1289 = vmatpush1.msra.mxu0 %v1288
  %1290 = vmatprep.subr.mxu0 0.0
  %v1291 = vand.u32 %v842, 4294901760
  %v1292 = vsub.f32 %v842, %v1291
  %v1293 = vand.u32 %v1292, 4294901760
  %1294 = vmatpush1.msra.mxu0 %v1293
  %1295 = vmatprep.subr.mxu0 0.0
  %1296 = vmatpush2.msra.mxu0 0.0
  %1297 = vmatprep.subr.mxu0 0.0
  %1298 = vmatpush2.msra.mxu0 0.0
  %1299 = vmatprep.subr.mxu0 0.0
  %1300 = vmatpush2.msra.mxu0 0.0
  %1301 = vmatprep.subr.mxu0 0.0
  %1302 = vmatpush2.msra.mxu0 0.0
  %1303 = vmatprep.subr.mxu0 0.0
  %1304 = vmatpush2.msra.mxu0 0.0
  %1305 = vmatprep.subr.mxu0 0.0
  %1306 = vmatpush2.msra.mxu0 0.0
  %1307 = vmatprep.subr.mxu0 0.0
  %1308 = vmatpush2.msra.mxu0 0.0
  %1309 = vmatprep.subr.mxu0 0.0
  %1310 = vmatpush2.msra.mxu0 0.0
  %1311 = vmatprep.subr.mxu0 0.0
  %1312 = vmatpush2.msra.mxu0 0.0
  %1313 = vmatprep.subr.mxu0 0.0
  %1314 = vmatpush2.msra.mxu0 0.0
  %1315 = vmatprep.subr.mxu0 0.0
  %1316 = vmatpush2.msra.mxu0 0.0
  %1317 = vmatprep.subr.mxu0 0.0
  %1318 = vmatpush2.msra.mxu0 0.0
  %1319 = vmatprep.subr.mxu0 0.0
  %1320 = vmatpush2.msra.mxu0 0.0
  %1321 = vmatprep.subr.mxu0 0.0
  %1322 = vmatpush2.msra.mxu0 0.0
  %1323 = vmatprep.subr.mxu0 0.0
  %1324 = vmatpush2.msra.mxu0 0.0
  %1325 = vmatprep.subr.mxu0 0.0
  %1326 = vmatpush2.msra.mxu0 0.0
  %1327 = vmatprep.mubr.f32.mxu0 0.0
  %v1328 = vand.u32 %v862, 4294901760
  %1329 = vmatmul.mubr.f32.gmra.mxu0 %v1328
  %v1330 = vpop.f32.mrf.mxu0
  %v1331 = vadd.f32 %v1235, %v1330
  %v1332 = vpop.f32.mrf.mxu0
  %1333 = vmatprep.mubr.f32.mxu0 0.0
  %v1334 = vand.u32 %v865, 4294901760
  %1335 = vmatmul.mubr.f32.gmra.mxu0 %v1334
  %v1336 = vpop.f32.mrf.mxu0
  %v1337 = vadd.f32 %v1243, %v1336
  %v1338 = vpop.f32.mrf.mxu0
  %1339 = vmatprep.mubr.f32.mxu0 0.0
  %v1340 = vand.u32 %v868, 4294901760
  %1341 = vmatmul.mubr.f32.gmra.mxu0 %v1340
  %v1342 = vpop.f32.mrf.mxu0
  %v1343 = vadd.f32 %v1251, %v1342
  %v1344 = vpop.f32.mrf.mxu0
  %1345 = vdwg.mxu0
  %1346 = vmatprep.subr.mxu0 0.0
  %1347 = vmatpush1.msra.mxu0 0.0
  %1348 = vmatprep.subr.mxu0 0.0
  %1349 = vmatpush1.msra.mxu0 0.0
  %1350 = vmatprep.subr.mxu0 0.0
  %1351 = vmatpush1.msra.mxu0 0.0
  %1352 = vmatprep.subr.mxu0 0.0
  %1353 = vmatpush1.msra.mxu0 0.0
  %1354 = vmatprep.subr.mxu0 0.0
  %1355 = vmatpush1.msra.mxu0 0.0
  %1356 = vmatprep.subr.mxu0 0.0
  %1357 = vmatpush1.msra.mxu0 0.0
  %1358 = vmatprep.subr.mxu0 0.0
  %1359 = vmatpush1.msra.mxu0 0.0
  %1360 = vmatprep.subr.mxu0 0.0
  %1361 = vmatpush1.msra.mxu0 0.0
  %1362 = vmatprep.subr.mxu0 0.0
  %1363 = vmatpush1.msra.mxu0 0.0
  %1364 = vmatprep.subr.mxu0 0.0
  %1365 = vmatpush1.msra.mxu0 0.0
  %1366 = vmatprep.subr.mxu0 0.0
  %1367 = vmatpush1.msra.mxu0 0.0
  %1368 = vmatprep.subr.mxu0 0.0
  %1369 = vmatpush1.msra.mxu0 0.0
  %1370 = vmatprep.subr.mxu0 0.0
  %1371 = vmatpush1.msra.mxu0 0.0
  %1372 = vmatprep.subr.mxu0 0.0
  %v1373 = vand.u32 %v872, 4294901760
  %1374 = vmatpush1.msra.mxu0 %v1373
  %1375 = vmatprep.subr.mxu0 0.0
  %v1376 = vand.u32 %v843, 4294901760
  %1377 = vmatpush1.msra.mxu0 %v1376
  %1378 = vmatprep.subr.mxu0 0.0
  %v1379 = vand.u32 %v842, 4294901760
  %1380 = vmatpush1.msra.mxu0 %v1379
  %1381 = vmatprep.subr.mxu0 0.0
  %1382 = vmatpush2.msra.mxu0 0.0
  %1383 = vmatprep.subr.mxu0 0.0
  %1384 = vmatpush2.msra.mxu0 0.0
  %1385 = vmatprep.subr.mxu0 0.0
  %1386 = vmatpush2.msra.mxu0 0.0
  %1387 = vmatprep.subr.mxu0 0.0
  %1388 = vmatpush2.msra.mxu0 0.0
  %1389 = vmatprep.subr.mxu0 0.0
  %1390 = vmatpush2.msra.mxu0 0.0
  %1391 = vmatprep.subr.mxu0 0.0
  %1392 = vmatpush2.msra.mxu0 0.0
  %1393 = vmatprep.subr.mxu0 0.0
  %1394 = vmatpush2.msra.mxu0 0.0
  %1395 = vmatprep.subr.mxu0 0.0
  %1396 = vmatpush2.msra.mxu0 0.0
  %1397 = vmatprep.subr.mxu0 0.0
  %1398 = vmatpush2.msra.mxu0 0.0
  %1399 = vmatprep.subr.mxu0 0.0
  %1400 = vmatpush2.msra.mxu0 0.0
  %1401 = vmatprep.subr.mxu0 0.0
  %1402 = vmatpush2.msra.mxu0 0.0
  %1403 = vmatprep.subr.mxu0 0.0
  %1404 = vmatpush2.msra.mxu0 0.0
  %1405 = vmatprep.subr.mxu0 0.0
  %1406 = vmatpush2.msra.mxu0 0.0
  %1407 = vmatprep.subr.mxu0 0.0
  %1408 = vmatpush2.msra.mxu0 0.0
  %1409 = vmatprep.subr.mxu0 0.0
  %1410 = vmatpush2.msra.mxu0 0.0
  %1411 = vmatprep.subr.mxu0 0.0
  %1412 = vmatpush2.msra.mxu0 0.0
  %1413 = vmatprep.mubr.f32.mxu0 0.0
  %v1414 = vand.u32 %v862, 4294901760
  %1415 = vmatmul.mubr.f32.gmra.mxu0 %v1414
  %v1416 = vpop.f32.mrf.mxu0
  %v1417 = vadd.f32 %v1331, %v1416
  %v1418 = vpop.f32.mrf.mxu0
  %1419 = vmatprep.mubr.f32.mxu0 0.0
  %v1420 = vand.u32 %v865, 4294901760
  %1421 = vmatmul.mubr.f32.gmra.mxu0 %v1420
  %v1422 = vpop.f32.mrf.mxu0
  %v1423 = vadd.f32 %v1337, %v1422
  %v1424 = vpop.f32.mrf.mxu0
  %1425 = vmatprep.mubr.f32.mxu0 0.0
  %v1426 = vand.u32 %v868, 4294901760
  %1427 = vmatmul.mubr.f32.gmra.mxu0 %v1426
  %v1428 = vpop.f32.mrf.mxu0
  %v1429 = vadd.f32 %v1343, %v1428
  %v1430 = vpop.f32.mrf.mxu0
  %1431 = vdwg.mxu0
  %v1432 = vmax.f32 %v1417, 0.0
  %v1433 = vmax.f32 %v1423, 0.0
  %v1434 = vmax.f32 %v1429, 0.0
  %s1435 = scalar_lea.vmem %s2, 24
  %v1436 = vld [vmem:[%s1435] sm:$0xff]
  %v1437 = vld [vmem:[%s1435 + $0x8] sm:$0xff]
  %v1438 = vld [vmem:[%s1435 + $0x10] sm:$0x3]
  %1439 = vset.pattern.permute.xlu0 2
  %1440 = vperm.xlu0 %1439, %v36
  %v1441 = vpop.permute.xlu0 %1440
  %1443 = vset.pattern.permute.xlu0 2
  %1444 = vperm.xlu0 %1443, %v37
  %v1445 = vpop.permute.xlu0 %1444
  %1447 = vset.pattern.permute.xlu0 2
  %1448 = vperm.xlu0 %1447, %v38
  %v1449 = vpop.permute.xlu0 %1448
  %v1452 = vsel %vm860, %v1436, 0
  %v1455 = vsel %vm860, %v1437, 0
  %v1458 = vsel %vm860, %v1438, 0
  %v1461 = vsel %vm870, %v1434, 0
  %1463 = vmatprep.subr.mxu0 0.0
  %1464 = vmatpush1.msra.mxu0 0.0
  %1465 = vmatprep.subr.mxu0 0.0
  %1466 = vmatpush1.msra.mxu0 0.0
  %1467 = vmatprep.subr.mxu0 0.0
  %1468 = vmatpush1.msra.mxu0 0.0
  %1469 = vmatprep.subr.mxu0 0.0
  %1470 = vmatpush1.msra.mxu0 0.0
  %1471 = vmatprep.subr.mxu0 0.0
  %1472 = vmatpush1.msra.mxu0 0.0
  %1473 = vmatprep.subr.mxu0 0.0
  %1474 = vmatpush1.msra.mxu0 0.0
  %1475 = vmatprep.subr.mxu0 0.0
  %1476 = vmatpush1.msra.mxu0 0.0
  %1477 = vmatprep.subr.mxu0 0.0
  %1478 = vmatpush1.msra.mxu0 0.0
  %1479 = vmatprep.subr.mxu0 0.0
  %1480 = vmatpush1.msra.mxu0 0.0
  %1481 = vmatprep.subr.mxu0 0.0
  %1482 = vmatpush1.msra.mxu0 0.0
  %1483 = vmatprep.subr.mxu0 0.0
  %1484 = vmatpush1.msra.mxu0 0.0
  %1485 = vmatprep.subr.mxu0 0.0
  %1486 = vmatpush1.msra.mxu0 0.0
  %1487 = vmatprep.subr.mxu0 0.0
  %1488 = vmatpush1.msra.mxu0 0.0
  %1489 = vmatprep.subr.mxu0 0.0
  %v1490 = vand.u32 %v1461, 4294901760
  %1491 = vmatpush1.msra.mxu0 %v1490
  %1492 = vmatprep.subr.mxu0 0.0
  %v1493 = vand.u32 %v1433, 4294901760
  %1494 = vmatpush1.msra.mxu0 %v1493
  %1495 = vmatprep.subr.mxu0 0.0
  %v1496 = vand.u32 %v1432, 4294901760
  %1497 = vmatpush1.msra.mxu0 %v1496
  %1498 = vmatprep.subr.mxu0 0.0
  %1499 = vmatpush2.msra.mxu0 0.0
  %1500 = vmatprep.subr.mxu0 0.0
  %1501 = vmatpush2.msra.mxu0 0.0
  %1502 = vmatprep.subr.mxu0 0.0
  %1503 = vmatpush2.msra.mxu0 0.0
  %1504 = vmatprep.subr.mxu0 0.0
  %1505 = vmatpush2.msra.mxu0 0.0
  %1506 = vmatprep.subr.mxu0 0.0
  %1507 = vmatpush2.msra.mxu0 0.0
  %1508 = vmatprep.subr.mxu0 0.0
  %1509 = vmatpush2.msra.mxu0 0.0
  %1510 = vmatprep.subr.mxu0 0.0
  %1511 = vmatpush2.msra.mxu0 0.0
  %1512 = vmatprep.subr.mxu0 0.0
  %1513 = vmatpush2.msra.mxu0 0.0
  %1514 = vmatprep.subr.mxu0 0.0
  %1515 = vmatpush2.msra.mxu0 0.0
  %1516 = vmatprep.subr.mxu0 0.0
  %1517 = vmatpush2.msra.mxu0 0.0
  %1518 = vmatprep.subr.mxu0 0.0
  %1519 = vmatpush2.msra.mxu0 0.0
  %1520 = vmatprep.subr.mxu0 0.0
  %1521 = vmatpush2.msra.mxu0 0.0
  %1522 = vmatprep.subr.mxu0 0.0
  %1523 = vmatpush2.msra.mxu0 0.0
  %1524 = vmatprep.subr.mxu0 0.0
  %1525 = vmatpush2.msra.mxu0 0.0
  %1526 = vmatprep.subr.mxu0 0.0
  %1527 = vmatpush2.msra.mxu0 0.0
  %1528 = vmatprep.subr.mxu0 0.0
  %1529 = vmatpush2.msra.mxu0 0.0
  %1530 = vmatprep.mubr.f32.mxu0 0.0
  %v1531 = vand.u32 %v1452, 4294901760
  %v1532 = vsub.f32 %v1452, %v1531
  %v1533 = vand.u32 %v1532, 4294901760
  %v1534 = vsub.f32 %v1532, %v1533
  %v1535 = vand.u32 %v1534, 4294901760
  %1536 = vmatmul.mubr.f32.gmra.mxu0 %v1535
  %v1537 = vpop.f32.mrf.mxu0
  %v1538 = vadd.f32 %v1441, %v1537
  %v1539 = vpop.f32.mrf.mxu0
  %1540 = vmatprep.mubr.f32.mxu0 0.0
  %v1541 = vand.u32 %v1455, 4294901760
  %v1542 = vsub.f32 %v1455, %v1541
  %v1543 = vand.u32 %v1542, 4294901760
  %v1544 = vsub.f32 %v1542, %v1543
  %v1545 = vand.u32 %v1544, 4294901760
  %1546 = vmatmul.mubr.f32.gmra.mxu0 %v1545
  %v1547 = vpop.f32.mrf.mxu0
  %v1548 = vadd.f32 %v1445, %v1547
  %v1549 = vpop.f32.mrf.mxu0
  %1550 = vmatprep.mubr.f32.mxu0 0.0
  %v1551 = vand.u32 %v1458, 4294901760
  %v1552 = vsub.f32 %v1458, %v1551
  %v1553 = vand.u32 %v1552, 4294901760
  %v1554 = vsub.f32 %v1552, %v1553
  %v1555 = vand.u32 %v1554, 4294901760
  %1556 = vmatmul.mubr.f32.gmra.mxu0 %v1555
  %v1557 = vpop.f32.mrf.mxu0
  %v1558 = vadd.f32 %v1449, %v1557
  %v1559 = vpop.f32.mrf.mxu0
  %1560 = vdwg.mxu0
  %1561 = vmatprep.subr.mxu0 0.0
  %1562 = vmatpush1.msra.mxu0 0.0
  %1563 = vmatprep.subr.mxu0 0.0
  %1564 = vmatpush1.msra.mxu0 0.0
  %1565 = vmatprep.subr.mxu0 0.0
  %1566 = vmatpush1.msra.mxu0 0.0
  %1567 = vmatprep.subr.mxu0 0.0
  %1568 = vmatpush1.msra.mxu0 0.0
  %1569 = vmatprep.subr.mxu0 0.0
  %1570 = vmatpush1.msra.mxu0 0.0
  %1571 = vmatprep.subr.mxu0 0.0
  %1572 = vmatpush1.msra.mxu0 0.0
  %1573 = vmatprep.subr.mxu0 0.0
  %1574 = vmatpush1.msra.mxu0 0.0
  %1575 = vmatprep.subr.mxu0 0.0
  %1576 = vmatpush1.msra.mxu0 0.0
  %1577 = vmatprep.subr.mxu0 0.0
  %1578 = vmatpush1.msra.mxu0 0.0
  %1579 = vmatprep.subr.mxu0 0.0
  %1580 = vmatpush1.msra.mxu0 0.0
  %1581 = vmatprep.subr.mxu0 0.0
  %1582 = vmatpush1.msra.mxu0 0.0
  %1583 = vmatprep.subr.mxu0 0.0
  %1584 = vmatpush1.msra.mxu0 0.0
  %1585 = vmatprep.subr.mxu0 0.0
  %1586 = vmatpush1.msra.mxu0 0.0
  %1587 = vmatprep.subr.mxu0 0.0
  %v1588 = vand.u32 %v1461, 4294901760
  %v1589 = vsub.f32 %v1461, %v1588
  %v1590 = vand.u32 %v1589, 4294901760
  %v1591 = vsub.f32 %v1589, %v1590
  %v1592 = vand.u32 %v1591, 4294901760
  %1593 = vmatpush1.msra.mxu0 %v1592
  %1594 = vmatprep.subr.mxu0 0.0
  %v1595 = vand.u32 %v1433, 4294901760
  %v1596 = vsub.f32 %v1433, %v1595
  %v1597 = vand.u32 %v1596, 4294901760
  %v1598 = vsub.f32 %v1596, %v1597
  %v1599 = vand.u32 %v1598, 4294901760
  %1600 = vmatpush1.msra.mxu0 %v1599
  %1601 = vmatprep.subr.mxu0 0.0
  %v1602 = vand.u32 %v1432, 4294901760
  %v1603 = vsub.f32 %v1432, %v1602
  %v1604 = vand.u32 %v1603, 4294901760
  %v1605 = vsub.f32 %v1603, %v1604
  %v1606 = vand.u32 %v1605, 4294901760
  %1607 = vmatpush1.msra.mxu0 %v1606
  %1608 = vmatprep.subr.mxu0 0.0
  %1609 = vmatpush2.msra.mxu0 0.0
  %1610 = vmatprep.subr.mxu0 0.0
  %1611 = vmatpush2.msra.mxu0 0.0
  %1612 = vmatprep.subr.mxu0 0.0
  %1613 = vmatpush2.msra.mxu0 0.0
  %1614 = vmatprep.subr.mxu0 0.0
  %1615 = vmatpush2.msra.mxu0 0.0
  %1616 = vmatprep.subr.mxu0 0.0
  %1617 = vmatpush2.msra.mxu0 0.0
  %1618 = vmatprep.subr.mxu0 0.0
  %1619 = vmatpush2.msra.mxu0 0.0
  %1620 = vmatprep.subr.mxu0 0.0
  %1621 = vmatpush2.msra.mxu0 0.0
  %1622 = vmatprep.subr.mxu0 0.0
  %1623 = vmatpush2.msra.mxu0 0.0
  %1624 = vmatprep.subr.mxu0 0.0
  %1625 = vmatpush2.msra.mxu0 0.0
  %1626 = vmatprep.subr.mxu0 0.0
  %1627 = vmatpush2.msra.mxu0 0.0
  %1628 = vmatprep.subr.mxu0 0.0
  %1629 = vmatpush2.msra.mxu0 0.0
  %1630 = vmatprep.subr.mxu0 0.0
  %1631 = vmatpush2.msra.mxu0 0.0
  %1632 = vmatprep.subr.mxu0 0.0
  %1633 = vmatpush2.msra.mxu0 0.0
  %1634 = vmatprep.subr.mxu0 0.0
  %1635 = vmatpush2.msra.mxu0 0.0
  %1636 = vmatprep.subr.mxu0 0.0
  %1637 = vmatpush2.msra.mxu0 0.0
  %1638 = vmatprep.subr.mxu0 0.0
  %1639 = vmatpush2.msra.mxu0 0.0
  %1640 = vmatprep.mubr.f32.mxu0 0.0
  %v1641 = vand.u32 %v1452, 4294901760
  %1642 = vmatmul.mubr.f32.gmra.mxu0 %v1641
  %v1643 = vpop.f32.mrf.mxu0
  %v1644 = vadd.f32 %v1538, %v1643
  %v1645 = vpop.f32.mrf.mxu0
  %1646 = vmatprep.mubr.f32.mxu0 0.0
  %v1647 = vand.u32 %v1455, 4294901760
  %1648 = vmatmul.mubr.f32.gmra.mxu0 %v1647
  %v1649 = vpop.f32.mrf.mxu0
  %v1650 = vadd.f32 %v1548, %v1649
  %v1651 = vpop.f32.mrf.mxu0
  %1652 = vmatprep.mubr.f32.mxu0 0.0
  %v1653 = vand.u32 %v1458, 4294901760
  %1654 = vmatmul.mubr.f32.gmra.mxu0 %v1653
  %v1655 = vpop.f32.mrf.mxu0
  %v1656 = vadd.f32 %v1558, %v1655
  %v1657 = vpop.f32.mrf.mxu0
  %1658 = vdwg.mxu0
  %1659 = vmatprep.subr.mxu0 0.0
  %1660 = vmatpush1.msra.mxu0 0.0
  %1661 = vmatprep.subr.mxu0 0.0
  %1662 = vmatpush1.msra.mxu0 0.0
  %1663 = vmatprep.subr.mxu0 0.0
  %1664 = vmatpush1.msra.mxu0 0.0
  %1665 = vmatprep.subr.mxu0 0.0
  %1666 = vmatpush1.msra.mxu0 0.0
  %1667 = vmatprep.subr.mxu0 0.0
  %1668 = vmatpush1.msra.mxu0 0.0
  %1669 = vmatprep.subr.mxu0 0.0
  %1670 = vmatpush1.msra.mxu0 0.0
  %1671 = vmatprep.subr.mxu0 0.0
  %1672 = vmatpush1.msra.mxu0 0.0
  %1673 = vmatprep.subr.mxu0 0.0
  %1674 = vmatpush1.msra.mxu0 0.0
  %1675 = vmatprep.subr.mxu0 0.0
  %1676 = vmatpush1.msra.mxu0 0.0
  %1677 = vmatprep.subr.mxu0 0.0
  %1678 = vmatpush1.msra.mxu0 0.0
  %1679 = vmatprep.subr.mxu0 0.0
  %1680 = vmatpush1.msra.mxu0 0.0
  %1681 = vmatprep.subr.mxu0 0.0
  %1682 = vmatpush1.msra.mxu0 0.0
  %1683 = vmatprep.subr.mxu0 0.0
  %1684 = vmatpush1.msra.mxu0 0.0
  %1685 = vmatprep.subr.mxu0 0.0
  %v1686 = vand.u32 %v1461, 4294901760
  %v1687 = vsub.f32 %v1461, %v1686
  %1688 = vmatpush1.msra.mxu0 %v1687
  %1689 = vmatprep.subr.mxu0 0.0
  %v1690 = vand.u32 %v1433, 4294901760
  %v1691 = vsub.f32 %v1433, %v1690
  %1692 = vmatpush1.msra.mxu0 %v1691
  %1693 = vmatprep.subr.mxu0 0.0
  %v1694 = vand.u32 %v1432, 4294901760
  %v1695 = vsub.f32 %v1432, %v1694
  %1696 = vmatpush1.msra.mxu0 %v1695
  %1697 = vmatprep.subr.mxu0 0.0
  %1698 = vmatpush2.msra.mxu0 0.0
  %1699 = vmatprep.subr.mxu0 0.0
  %1700 = vmatpush2.msra.mxu0 0.0
  %1701 = vmatprep.subr.mxu0 0.0
  %1702 = vmatpush2.msra.mxu0 0.0
  %1703 = vmatprep.subr.mxu0 0.0
  %1704 = vmatpush2.msra.mxu0 0.0
  %1705 = vmatprep.subr.mxu0 0.0
  %1706 = vmatpush2.msra.mxu0 0.0
  %1707 = vmatprep.subr.mxu0 0.0
  %1708 = vmatpush2.msra.mxu0 0.0
  %1709 = vmatprep.subr.mxu0 0.0
  %1710 = vmatpush2.msra.mxu0 0.0
  %1711 = vmatprep.subr.mxu0 0.0
  %1712 = vmatpush2.msra.mxu0 0.0
  %1713 = vmatprep.subr.mxu0 0.0
  %1714 = vmatpush2.msra.mxu0 0.0
  %1715 = vmatprep.subr.mxu0 0.0
  %1716 = vmatpush2.msra.mxu0 0.0
  %1717 = vmatprep.subr.mxu0 0.0
  %1718 = vmatpush2.msra.mxu0 0.0
  %1719 = vmatprep.subr.mxu0 0.0
  %1720 = vmatpush2.msra.mxu0 0.0
  %1721 = vmatprep.subr.mxu0 0.0
  %1722 = vmatpush2.msra.mxu0 0.0
  %1723 = vmatprep.subr.mxu0 0.0
  %1724 = vmatpush2.msra.mxu0 0.0
  %1725 = vmatprep.subr.mxu0 0.0
  %1726 = vmatpush2.msra.mxu0 0.0
  %1727 = vmatprep.subr.mxu0 0.0
  %1728 = vmatpush2.msra.mxu0 0.0
  %1729 = vmatprep.mubr.f32.mxu0 0.0
  %v1730 = vand.u32 %v1452, 4294901760
  %v1731 = vsub.f32 %v1452, %v1730
  %1732 = vmatmul.mubr.f32.gmra.mxu0 %v1731
  %v1733 = vpop.f32.mrf.mxu0
  %v1734 = vadd.f32 %v1644, %v1733
  %v1735 = vpop.f32.mrf.mxu0
  %1736 = vmatprep.mubr.f32.mxu0 0.0
  %v1737 = vand.u32 %v1455, 4294901760
  %v1738 = vsub.f32 %v1455, %v1737
  %1739 = vmatmul.mubr.f32.gmra.mxu0 %v1738
  %v1740 = vpop.f32.mrf.mxu0
  %v1741 = vadd.f32 %v1650, %v1740
  %v1742 = vpop.f32.mrf.mxu0
  %1743 = vmatprep.mubr.f32.mxu0 0.0
  %v1744 = vand.u32 %v1458, 4294901760
  %v1745 = vsub.f32 %v1458, %v1744
  %1746 = vmatmul.mubr.f32.gmra.mxu0 %v1745
  %v1747 = vpop.f32.mrf.mxu0
  %v1748 = vadd.f32 %v1656, %v1747
  %v1749 = vpop.f32.mrf.mxu0
  %1750 = vdwg.mxu0
  %1751 = vmatprep.subr.mxu0 0.0
  %1752 = vmatpush1.msra.mxu0 0.0
  %1753 = vmatprep.subr.mxu0 0.0
  %1754 = vmatpush1.msra.mxu0 0.0
  %1755 = vmatprep.subr.mxu0 0.0
  %1756 = vmatpush1.msra.mxu0 0.0
  %1757 = vmatprep.subr.mxu0 0.0
  %1758 = vmatpush1.msra.mxu0 0.0
  %1759 = vmatprep.subr.mxu0 0.0
  %1760 = vmatpush1.msra.mxu0 0.0
  %1761 = vmatprep.subr.mxu0 0.0
  %1762 = vmatpush1.msra.mxu0 0.0
  %1763 = vmatprep.subr.mxu0 0.0
  %1764 = vmatpush1.msra.mxu0 0.0
  %1765 = vmatprep.subr.mxu0 0.0
  %1766 = vmatpush1.msra.mxu0 0.0
  %1767 = vmatprep.subr.mxu0 0.0
  %1768 = vmatpush1.msra.mxu0 0.0
  %1769 = vmatprep.subr.mxu0 0.0
  %1770 = vmatpush1.msra.mxu0 0.0
  %1771 = vmatprep.subr.mxu0 0.0
  %1772 = vmatpush1.msra.mxu0 0.0
  %1773 = vmatprep.subr.mxu0 0.0
  %1774 = vmatpush1.msra.mxu0 0.0
  %1775 = vmatprep.subr.mxu0 0.0
  %1776 = vmatpush1.msra.mxu0 0.0
  %1777 = vmatprep.subr.mxu0 0.0
  %v1778 = vand.u32 %v1461, 4294901760
  %1779 = vmatpush1.msra.mxu0 %v1778
  %1780 = vmatprep.subr.mxu0 0.0
  %v1781 = vand.u32 %v1433, 4294901760
  %1782 = vmatpush1.msra.mxu0 %v1781
  %1783 = vmatprep.subr.mxu0 0.0
  %v1784 = vand.u32 %v1432, 4294901760
  %1785 = vmatpush1.msra.mxu0 %v1784
  %1786 = vmatprep.subr.mxu0 0.0
  %1787 = vmatpush2.msra.mxu0 0.0
  %1788 = vmatprep.subr.mxu0 0.0
  %1789 = vmatpush2.msra.mxu0 0.0
  %1790 = vmatprep.subr.mxu0 0.0
  %1791 = vmatpush2.msra.mxu0 0.0
  %1792 = vmatprep.subr.mxu0 0.0
  %1793 = vmatpush2.msra.mxu0 0.0
  %1794 = vmatprep.subr.mxu0 0.0
  %1795 = vmatpush2.msra.mxu0 0.0
  %1796 = vmatprep.subr.mxu0 0.0
  %1797 = vmatpush2.msra.mxu0 0.0
  %1798 = vmatprep.subr.mxu0 0.0
  %1799 = vmatpush2.msra.mxu0 0.0
  %1800 = vmatprep.subr.mxu0 0.0
  %1801 = vmatpush2.msra.mxu0 0.0
  %1802 = vmatprep.subr.mxu0 0.0
  %1803 = vmatpush2.msra.mxu0 0.0
  %1804 = vmatprep.subr.mxu0 0.0
  %1805 = vmatpush2.msra.mxu0 0.0
  %1806 = vmatprep.subr.mxu0 0.0
  %1807 = vmatpush2.msra.mxu0 0.0
  %1808 = vmatprep.subr.mxu0 0.0
  %1809 = vmatpush2.msra.mxu0 0.0
  %1810 = vmatprep.subr.mxu0 0.0
  %1811 = vmatpush2.msra.mxu0 0.0
  %1812 = vmatprep.subr.mxu0 0.0
  %1813 = vmatpush2.msra.mxu0 0.0
  %1814 = vmatprep.subr.mxu0 0.0
  %1815 = vmatpush2.msra.mxu0 0.0
  %1816 = vmatprep.subr.mxu0 0.0
  %1817 = vmatpush2.msra.mxu0 0.0
  %1818 = vmatprep.mubr.f32.mxu0 0.0
  %v1819 = vand.u32 %v1452, 4294901760
  %v1820 = vsub.f32 %v1452, %v1819
  %v1821 = vand.u32 %v1820, 4294901760
  %1822 = vmatmul.mubr.f32.gmra.mxu0 %v1821
  %v1823 = vpop.f32.mrf.mxu0
  %v1824 = vadd.f32 %v1734, %v1823
  %v1825 = vpop.f32.mrf.mxu0
  %1826 = vmatprep.mubr.f32.mxu0 0.0
  %v1827 = vand.u32 %v1455, 4294901760
  %v1828 = vsub.f32 %v1455, %v1827
  %v1829 = vand.u32 %v1828, 4294901760
  %1830 = vmatmul.mubr.f32.gmra.mxu0 %v1829
  %v1831 = vpop.f32.mrf.mxu0
  %v1832 = vadd.f32 %v1741, %v1831
  %v1833 = vpop.f32.mrf.mxu0
  %1834 = vmatprep.mubr.f32.mxu0 0.0
  %v1835 = vand.u32 %v1458, 4294901760
  %v1836 = vsub.f32 %v1458, %v1835
  %v1837 = vand.u32 %v1836, 4294901760
  %1838 = vmatmul.mubr.f32.gmra.mxu0 %v1837
  %v1839 = vpop.f32.mrf.mxu0
  %v1840 = vadd.f32 %v1748, %v1839
  %v1841 = vpop.f32.mrf.mxu0
  %1842 = vdwg.mxu0
  %1843 = vmatprep.subr.mxu0 0.0
  %1844 = vmatpush1.msra.mxu0 0.0
  %1845 = vmatprep.subr.mxu0 0.0
  %1846 = vmatpush1.msra.mxu0 0.0
  %1847 = vmatprep.subr.mxu0 0.0
  %1848 = vmatpush1.msra.mxu0 0.0
  %1849 = vmatprep.subr.mxu0 0.0
  %1850 = vmatpush1.msra.mxu0 0.0
  %1851 = vmatprep.subr.mxu0 0.0
  %1852 = vmatpush1.msra.mxu0 0.0
  %1853 = vmatprep.subr.mxu0 0.0
  %1854 = vmatpush1.msra.mxu0 0.0
  %1855 = vmatprep.subr.mxu0 0.0
  %1856 = vmatpush1.msra.mxu0 0.0
  %1857 = vmatprep.subr.mxu0 0.0
  %1858 = vmatpush1.msra.mxu0 0.0
  %1859 = vmatprep.subr.mxu0 0.0
  %1860 = vmatpush1.msra.mxu0 0.0
  %1861 = vmatprep.subr.mxu0 0.0
  %1862 = vmatpush1.msra.mxu0 0.0
  %1863 = vmatprep.subr.mxu0 0.0
  %1864 = vmatpush1.msra.mxu0 0.0
  %1865 = vmatprep.subr.mxu0 0.0
  %1866 = vmatpush1.msra.mxu0 0.0
  %1867 = vmatprep.subr.mxu0 0.0
  %1868 = vmatpush1.msra.mxu0 0.0
  %1869 = vmatprep.subr.mxu0 0.0
  %v1870 = vand.u32 %v1461, 4294901760
  %v1871 = vsub.f32 %v1461, %v1870
  %v1872 = vand.u32 %v1871, 4294901760
  %1873 = vmatpush1.msra.mxu0 %v1872
  %1874 = vmatprep.subr.mxu0 0.0
  %v1875 = vand.u32 %v1433, 4294901760
  %v1876 = vsub.f32 %v1433, %v1875
  %v1877 = vand.u32 %v1876, 4294901760
  %1878 = vmatpush1.msra.mxu0 %v1877
  %1879 = vmatprep.subr.mxu0 0.0
  %v1880 = vand.u32 %v1432, 4294901760
  %v1881 = vsub.f32 %v1432, %v1880
  %v1882 = vand.u32 %v1881, 4294901760
  %1883 = vmatpush1.msra.mxu0 %v1882
  %1884 = vmatprep.subr.mxu0 0.0
  %1885 = vmatpush2.msra.mxu0 0.0
  %1886 = vmatprep.subr.mxu0 0.0
  %1887 = vmatpush2.msra.mxu0 0.0
  %1888 = vmatprep.subr.mxu0 0.0
  %1889 = vmatpush2.msra.mxu0 0.0
  %1890 = vmatprep.subr.mxu0 0.0
  %1891 = vmatpush2.msra.mxu0 0.0
  %1892 = vmatprep.subr.mxu0 0.0
  %1893 = vmatpush2.msra.mxu0 0.0
  %1894 = vmatprep.subr.mxu0 0.0
  %1895 = vmatpush2.msra.mxu0 0.0
  %1896 = vmatprep.subr.mxu0 0.0
  %1897 = vmatpush2.msra.mxu0 0.0
  %1898 = vmatprep.subr.mxu0 0.0
  %1899 = vmatpush2.msra.mxu0 0.0
  %1900 = vmatprep.subr.mxu0 0.0
  %1901 = vmatpush2.msra.mxu0 0.0
  %1902 = vmatprep.subr.mxu0 0.0
  %1903 = vmatpush2.msra.mxu0 0.0
  %1904 = vmatprep.subr.mxu0 0.0
  %1905 = vmatpush2.msra.mxu0 0.0
  %1906 = vmatprep.subr.mxu0 0.0
  %1907 = vmatpush2.msra.mxu0 0.0
  %1908 = vmatprep.subr.mxu0 0.0
  %1909 = vmatpush2.msra.mxu0 0.0
  %1910 = vmatprep.subr.mxu0 0.0
  %1911 = vmatpush2.msra.mxu0 0.0
  %1912 = vmatprep.subr.mxu0 0.0
  %1913 = vmatpush2.msra.mxu0 0.0
  %1914 = vmatprep.subr.mxu0 0.0
  %1915 = vmatpush2.msra.mxu0 0.0
  %1916 = vmatprep.mubr.f32.mxu0 0.0
  %v1917 = vand.u32 %v1452, 4294901760
  %1918 = vmatmul.mubr.f32.gmra.mxu0 %v1917
  %v1919 = vpop.f32.mrf.mxu0
  %v1920 = vadd.f32 %v1824, %v1919
  %v1921 = vpop.f32.mrf.mxu0
  %1922 = vmatprep.mubr.f32.mxu0 0.0
  %v1923 = vand.u32 %v1455, 4294901760
  %1924 = vmatmul.mubr.f32.gmra.mxu0 %v1923
  %v1925 = vpop.f32.mrf.mxu0
  %v1926 = vadd.f32 %v1832, %v1925
  %v1927 = vpop.f32.mrf.mxu0
  %1928 = vmatprep.mubr.f32.mxu0 0.0
  %v1929 = vand.u32 %v1458, 4294901760
  %1930 = vmatmul.mubr.f32.gmra.mxu0 %v1929
  %v1931 = vpop.f32.mrf.mxu0
  %v1932 = vadd.f32 %v1840, %v1931
  %v1933 = vpop.f32.mrf.mxu0
  %1934 = vdwg.mxu0
  %1935 = vmatprep.subr.mxu0 0.0
  %1936 = vmatpush1.msra.mxu0 0.0
  %1937 = vmatprep.subr.mxu0 0.0
  %1938 = vmatpush1.msra.mxu0 0.0
  %1939 = vmatprep.subr.mxu0 0.0
  %1940 = vmatpush1.msra.mxu0 0.0
  %1941 = vmatprep.subr.mxu0 0.0
  %1942 = vmatpush1.msra.mxu0 0.0
  %1943 = vmatprep.subr.mxu0 0.0
  %1944 = vmatpush1.msra.mxu0 0.0
  %1945 = vmatprep.subr.mxu0 0.0
  %1946 = vmatpush1.msra.mxu0 0.0
  %1947 = vmatprep.subr.mxu0 0.0
  %1948 = vmatpush1.msra.mxu0 0.0
  %1949 = vmatprep.subr.mxu0 0.0
  %1950 = vmatpush1.msra.mxu0 0.0
  %1951 = vmatprep.subr.mxu0 0.0
  %1952 = vmatpush1.msra.mxu0 0.0
  %1953 = vmatprep.subr.mxu0 0.0
  %1954 = vmatpush1.msra.mxu0 0.0
  %1955 = vmatprep.subr.mxu0 0.0
  %1956 = vmatpush1.msra.mxu0 0.0
  %1957 = vmatprep.subr.mxu0 0.0
  %1958 = vmatpush1.msra.mxu0 0.0
  %1959 = vmatprep.subr.mxu0 0.0
  %1960 = vmatpush1.msra.mxu0 0.0
  %1961 = vmatprep.subr.mxu0 0.0
  %v1962 = vand.u32 %v1461, 4294901760
  %1963 = vmatpush1.msra.mxu0 %v1962
  %1964 = vmatprep.subr.mxu0 0.0
  %v1965 = vand.u32 %v1433, 4294901760
  %1966 = vmatpush1.msra.mxu0 %v1965
  %1967 = vmatprep.subr.mxu0 0.0
  %v1968 = vand.u32 %v1432, 4294901760
  %1969 = vmatpush1.msra.mxu0 %v1968
  %1970 = vmatprep.subr.mxu0 0.0
  %1971 = vmatpush2.msra.mxu0 0.0
  %1972 = vmatprep.subr.mxu0 0.0
  %1973 = vmatpush2.msra.mxu0 0.0
  %1974 = vmatprep.subr.mxu0 0.0
  %1975 = vmatpush2.msra.mxu0 0.0
  %1976 = vmatprep.subr.mxu0 0.0
  %1977 = vmatpush2.msra.mxu0 0.0
  %1978 = vmatprep.subr.mxu0 0.0
  %1979 = vmatpush2.msra.mxu0 0.0
  %1980 = vmatprep.subr.mxu0 0.0
  %1981 = vmatpush2.msra.mxu0 0.0
  %1982 = vmatprep.subr.mxu0 0.0
  %1983 = vmatpush2.msra.mxu0 0.0
  %1984 = vmatprep.subr.mxu0 0.0
  %1985 = vmatpush2.msra.mxu0 0.0
  %1986 = vmatprep.subr.mxu0 0.0
  %1987 = vmatpush2.msra.mxu0 0.0
  %1988 = vmatprep.subr.mxu0 0.0
  %1989 = vmatpush2.msra.mxu0 0.0
  %1990 = vmatprep.subr.mxu0 0.0
  %1991 = vmatpush2.msra.mxu0 0.0
  %1992 = vmatprep.subr.mxu0 0.0
  %1993 = vmatpush2.msra.mxu0 0.0
  %1994 = vmatprep.subr.mxu0 0.0
  %1995 = vmatpush2.msra.mxu0 0.0
  %1996 = vmatprep.subr.mxu0 0.0
  %1997 = vmatpush2.msra.mxu0 0.0
  %1998 = vmatprep.subr.mxu0 0.0
  %1999 = vmatpush2.msra.mxu0 0.0
  %2000 = vmatprep.subr.mxu0 0.0
  %2001 = vmatpush2.msra.mxu0 0.0
  %2002 = vmatprep.mubr.f32.mxu0 0.0
  %v2003 = vand.u32 %v1452, 4294901760
  %2004 = vmatmul.mubr.f32.gmra.mxu0 %v2003
  %v2005 = vpop.f32.mrf.mxu0
  %v2006 = vadd.f32 %v1920, %v2005
  %v2007 = vpop.f32.mrf.mxu0
  %2008 = vmatprep.mubr.f32.mxu0 0.0
  %v2009 = vand.u32 %v1455, 4294901760
  %2010 = vmatmul.mubr.f32.gmra.mxu0 %v2009
  %v2011 = vpop.f32.mrf.mxu0
  %v2012 = vadd.f32 %v1926, %v2011
  %v2013 = vpop.f32.mrf.mxu0
  %2014 = vmatprep.mubr.f32.mxu0 0.0
  %v2015 = vand.u32 %v1458, 4294901760
  %2016 = vmatmul.mubr.f32.gmra.mxu0 %v2015
  %v2017 = vpop.f32.mrf.mxu0
  %v2018 = vadd.f32 %v1932, %v2017
  %v2019 = vpop.f32.mrf.mxu0
  %2020 = vdwg.mxu0
  %v2021 = vmax.f32 %v2006, 0.0
  %v2022 = vmax.f32 %v2012, 0.0
  %v2023 = vmax.f32 %v2018, 0.0
  %v2024 = vld [vmem:[%s3] sm:$0x3f]
  %2025 = vset.pattern.permute.xlu0 3
  %2026 = vperm.xlu0 %2025, %v36
  %v2027 = vpop.permute.xlu0 %2026
  %v2030 = vsel %vm860, %v2024, 0
  %v2033 = vsel %vm870, %v2023, 0
  %2035 = vmatprep.subr.mxu0 0.0
  %2036 = vmatpush1.msra.mxu0 0.0
  %2037 = vmatprep.subr.mxu0 0.0
  %2038 = vmatpush1.msra.mxu0 0.0
  %2039 = vmatprep.subr.mxu0 0.0
  %2040 = vmatpush1.msra.mxu0 0.0
  %2041 = vmatprep.subr.mxu0 0.0
  %2042 = vmatpush1.msra.mxu0 0.0
  %2043 = vmatprep.subr.mxu0 0.0
  %2044 = vmatpush1.msra.mxu0 0.0
  %2045 = vmatprep.subr.mxu0 0.0
  %2046 = vmatpush1.msra.mxu0 0.0
  %2047 = vmatprep.subr.mxu0 0.0
  %2048 = vmatpush1.msra.mxu0 0.0
  %2049 = vmatprep.subr.mxu0 0.0
  %2050 = vmatpush1.msra.mxu0 0.0
  %2051 = vmatprep.subr.mxu0 0.0
  %2052 = vmatpush1.msra.mxu0 0.0
  %2053 = vmatprep.subr.mxu0 0.0
  %2054 = vmatpush1.msra.mxu0 0.0
  %2055 = vmatprep.subr.mxu0 0.0
  %2056 = vmatpush1.msra.mxu0 0.0
  %2057 = vmatprep.subr.mxu0 0.0
  %2058 = vmatpush1.msra.mxu0 0.0
  %2059 = vmatprep.subr.mxu0 0.0
  %2060 = vmatpush1.msra.mxu0 0.0
  %2061 = vmatprep.subr.mxu0 0.0
  %v2062 = vand.u32 %v2033, 4294901760
  %2063 = vmatpush1.msra.mxu0 %v2062
  %2064 = vmatprep.subr.mxu0 0.0
  %v2065 = vand.u32 %v2022, 4294901760
  %2066 = vmatpush1.msra.mxu0 %v2065
  %2067 = vmatprep.subr.mxu0 0.0
  %v2068 = vand.u32 %v2021, 4294901760
  %2069 = vmatpush1.msra.mxu0 %v2068
  %2070 = vmatprep.subr.mxu0 0.0
  %2071 = vmatpush2.msra.mxu0 0.0
  %2072 = vmatprep.subr.mxu0 0.0
  %2073 = vmatpush2.msra.mxu0 0.0
  %2074 = vmatprep.subr.mxu0 0.0
  %2075 = vmatpush2.msra.mxu0 0.0
  %2076 = vmatprep.subr.mxu0 0.0
  %2077 = vmatpush2.msra.mxu0 0.0
  %2078 = vmatprep.subr.mxu0 0.0
  %2079 = vmatpush2.msra.mxu0 0.0
  %2080 = vmatprep.subr.mxu0 0.0
  %2081 = vmatpush2.msra.mxu0 0.0
  %2082 = vmatprep.subr.mxu0 0.0
  %2083 = vmatpush2.msra.mxu0 0.0
  %2084 = vmatprep.subr.mxu0 0.0
  %2085 = vmatpush2.msra.mxu0 0.0
  %2086 = vmatprep.subr.mxu0 0.0
  %2087 = vmatpush2.msra.mxu0 0.0
  %2088 = vmatprep.subr.mxu0 0.0
  %2089 = vmatpush2.msra.mxu0 0.0
  %2090 = vmatprep.subr.mxu0 0.0
  %2091 = vmatpush2.msra.mxu0 0.0
  %2092 = vmatprep.subr.mxu0 0.0
  %2093 = vmatpush2.msra.mxu0 0.0
  %2094 = vmatprep.subr.mxu0 0.0
  %2095 = vmatpush2.msra.mxu0 0.0
  %2096 = vmatprep.subr.mxu0 0.0
  %2097 = vmatpush2.msra.mxu0 0.0
  %2098 = vmatprep.subr.mxu0 0.0
  %2099 = vmatpush2.msra.mxu0 0.0
  %2100 = vmatprep.subr.mxu0 0.0
  %2101 = vmatpush2.msra.mxu0 0.0
  %2102 = vmatprep.mubr.f32.mxu0 0.0
  %v2103 = vand.u32 %v2030, 4294901760
  %v2104 = vsub.f32 %v2030, %v2103
  %v2105 = vand.u32 %v2104, 4294901760
  %v2106 = vsub.f32 %v2104, %v2105
  %v2107 = vand.u32 %v2106, 4294901760
  %2108 = vmatmul.mubr.f32.gmra.mxu0 %v2107
  %v2109 = vpop.f32.mrf.mxu0
  %v2110 = vadd.f32 %v2027, %v2109
  %v2111 = vpop.f32.mrf.mxu0
  %2112 = vdwg.mxu0
  %2113 = vmatprep.subr.mxu0 0.0
  %2114 = vmatpush1.msra.mxu0 0.0
  %2115 = vmatprep.subr.mxu0 0.0
  %2116 = vmatpush1.msra.mxu0 0.0
  %2117 = vmatprep.subr.mxu0 0.0
  %2118 = vmatpush1.msra.mxu0 0.0
  %2119 = vmatprep.subr.mxu0 0.0
  %2120 = vmatpush1.msra.mxu0 0.0
  %2121 = vmatprep.subr.mxu0 0.0
  %2122 = vmatpush1.msra.mxu0 0.0
  %2123 = vmatprep.subr.mxu0 0.0
  %2124 = vmatpush1.msra.mxu0 0.0
  %2125 = vmatprep.subr.mxu0 0.0
  %2126 = vmatpush1.msra.mxu0 0.0
  %2127 = vmatprep.subr.mxu0 0.0
  %2128 = vmatpush1.msra.mxu0 0.0
  %2129 = vmatprep.subr.mxu0 0.0
  %2130 = vmatpush1.msra.mxu0 0.0
  %2131 = vmatprep.subr.mxu0 0.0
  %2132 = vmatpush1.msra.mxu0 0.0
  %2133 = vmatprep.subr.mxu0 0.0
  %2134 = vmatpush1.msra.mxu0 0.0
  %2135 = vmatprep.subr.mxu0 0.0
  %2136 = vmatpush1.msra.mxu0 0.0
  %2137 = vmatprep.subr.mxu0 0.0
  %2138 = vmatpush1.msra.mxu0 0.0
  %2139 = vmatprep.subr.mxu0 0.0
  %v2140 = vand.u32 %v2033, 4294901760
  %v2141 = vsub.f32 %v2033, %v2140
  %v2142 = vand.u32 %v2141, 4294901760
  %v2143 = vsub.f32 %v2141, %v2142
  %v2144 = vand.u32 %v2143, 4294901760
  %2145 = vmatpush1.msra.mxu0 %v2144
  %2146 = vmatprep.subr.mxu0 0.0
  %v2147 = vand.u32 %v2022, 4294901760
  %v2148 = vsub.f32 %v2022, %v2147
  %v2149 = vand.u32 %v2148, 4294901760
  %v2150 = vsub.f32 %v2148, %v2149
  %v2151 = vand.u32 %v2150, 4294901760
  %2152 = vmatpush1.msra.mxu0 %v2151
  %2153 = vmatprep.subr.mxu0 0.0
  %v2154 = vand.u32 %v2021, 4294901760
  %v2155 = vsub.f32 %v2021, %v2154
  %v2156 = vand.u32 %v2155, 4294901760
  %v2157 = vsub.f32 %v2155, %v2156
  %v2158 = vand.u32 %v2157, 4294901760
  %2159 = vmatpush1.msra.mxu0 %v2158
  %2160 = vmatprep.subr.mxu0 0.0
  %2161 = vmatpush2.msra.mxu0 0.0
  %2162 = vmatprep.subr.mxu0 0.0
  %2163 = vmatpush2.msra.mxu0 0.0
  %2164 = vmatprep.subr.mxu0 0.0
  %2165 = vmatpush2.msra.mxu0 0.0
  %2166 = vmatprep.subr.mxu0 0.0
  %2167 = vmatpush2.msra.mxu0 0.0
  %2168 = vmatprep.subr.mxu0 0.0
  %2169 = vmatpush2.msra.mxu0 0.0
  %2170 = vmatprep.subr.mxu0 0.0
  %2171 = vmatpush2.msra.mxu0 0.0
  %2172 = vmatprep.subr.mxu0 0.0
  %2173 = vmatpush2.msra.mxu0 0.0
  %2174 = vmatprep.subr.mxu0 0.0
  %2175 = vmatpush2.msra.mxu0 0.0
  %2176 = vmatprep.subr.mxu0 0.0
  %2177 = vmatpush2.msra.mxu0 0.0
  %2178 = vmatprep.subr.mxu0 0.0
  %2179 = vmatpush2.msra.mxu0 0.0
  %2180 = vmatprep.subr.mxu0 0.0
  %2181 = vmatpush2.msra.mxu0 0.0
  %2182 = vmatprep.subr.mxu0 0.0
  %2183 = vmatpush2.msra.mxu0 0.0
  %2184 = vmatprep.subr.mxu0 0.0
  %2185 = vmatpush2.msra.mxu0 0.0
  %2186 = vmatprep.subr.mxu0 0.0
  %2187 = vmatpush2.msra.mxu0 0.0
  %2188 = vmatprep.subr.mxu0 0.0
  %2189 = vmatpush2.msra.mxu0 0.0
  %2190 = vmatprep.subr.mxu0 0.0
  %2191 = vmatpush2.msra.mxu0 0.0
  %2192 = vmatprep.mubr.f32.mxu0 0.0
  %v2193 = vand.u32 %v2030, 4294901760
  %2194 = vmatmul.mubr.f32.gmra.mxu0 %v2193
  %v2195 = vpop.f32.mrf.mxu0
  %v2196 = vadd.f32 %v2110, %v2195
  %v2197 = vpop.f32.mrf.mxu0
  %2198 = vdwg.mxu0
  %2199 = vmatprep.subr.mxu0 0.0
  %2200 = vmatpush1.msra.mxu0 0.0
  %2201 = vmatprep.subr.mxu0 0.0
  %2202 = vmatpush1.msra.mxu0 0.0
  %2203 = vmatprep.subr.mxu0 0.0
  %2204 = vmatpush1.msra.mxu0 0.0
  %2205 = vmatprep.subr.mxu0 0.0
  %2206 = vmatpush1.msra.mxu0 0.0
  %2207 = vmatprep.subr.mxu0 0.0
  %2208 = vmatpush1.msra.mxu0 0.0
  %2209 = vmatprep.subr.mxu0 0.0
  %2210 = vmatpush1.msra.mxu0 0.0
  %2211 = vmatprep.subr.mxu0 0.0
  %2212 = vmatpush1.msra.mxu0 0.0
  %2213 = vmatprep.subr.mxu0 0.0
  %2214 = vmatpush1.msra.mxu0 0.0
  %2215 = vmatprep.subr.mxu0 0.0
  %2216 = vmatpush1.msra.mxu0 0.0
  %2217 = vmatprep.subr.mxu0 0.0
  %2218 = vmatpush1.msra.mxu0 0.0
  %2219 = vmatprep.subr.mxu0 0.0
  %2220 = vmatpush1.msra.mxu0 0.0
  %2221 = vmatprep.subr.mxu0 0.0
  %2222 = vmatpush1.msra.mxu0 0.0
  %2223 = vmatprep.subr.mxu0 0.0
  %2224 = vmatpush1.msra.mxu0 0.0
  %2225 = vmatprep.subr.mxu0 0.0
  %v2226 = vand.u32 %v2033, 4294901760
  %v2227 = vsub.f32 %v2033, %v2226
  %2228 = vmatpush1.msra.mxu0 %v2227
  %2229 = vmatprep.subr.mxu0 0.0
  %v2230 = vand.u32 %v2022, 4294901760
  %v2231 = vsub.f32 %v2022, %v2230
  %2232 = vmatpush1.msra.mxu0 %v2231
  %2233 = vmatprep.subr.mxu0 0.0
  %v2234 = vand.u32 %v2021, 4294901760
  %v2235 = vsub.f32 %v2021, %v2234
  %2236 = vmatpush1.msra.mxu0 %v2235
  %2237 = vmatprep.subr.mxu0 0.0
  %2238 = vmatpush2.msra.mxu0 0.0
  %2239 = vmatprep.subr.mxu0 0.0
  %2240 = vmatpush2.msra.mxu0 0.0
  %2241 = vmatprep.subr.mxu0 0.0
  %2242 = vmatpush2.msra.mxu0 0.0
  %2243 = vmatprep.subr.mxu0 0.0
  %2244 = vmatpush2.msra.mxu0 0.0
  %2245 = vmatprep.subr.mxu0 0.0
  %2246 = vmatpush2.msra.mxu0 0.0
  %2247 = vmatprep.subr.mxu0 0.0
  %2248 = vmatpush2.msra.mxu0 0.0
  %2249 = vmatprep.subr.mxu0 0.0
  %2250 = vmatpush2.msra.mxu0 0.0
  %2251 = vmatprep.subr.mxu0 0.0
  %2252 = vmatpush2.msra.mxu0 0.0
  %2253 = vmatprep.subr.mxu0 0.0
  %2254 = vmatpush2.msra.mxu0 0.0
  %2255 = vmatprep.subr.mxu0 0.0
  %2256 = vmatpush2.msra.mxu0 0.0
  %2257 = vmatprep.subr.mxu0 0.0
  %2258 = vmatpush2.msra.mxu0 0.0
  %2259 = vmatprep.subr.mxu0 0.0
  %2260 = vmatpush2.msra.mxu0 0.0
  %2261 = vmatprep.subr.mxu0 0.0
  %2262 = vmatpush2.msra.mxu0 0.0
  %2263 = vmatprep.subr.mxu0 0.0
  %2264 = vmatpush2.msra.mxu0 0.0
  %2265 = vmatprep.subr.mxu0 0.0
  %2266 = vmatpush2.msra.mxu0 0.0
  %2267 = vmatprep.subr.mxu0 0.0
  %2268 = vmatpush2.msra.mxu0 0.0
  %2269 = vmatprep.mubr.f32.mxu0 0.0
  %v2270 = vand.u32 %v2030, 4294901760
  %v2271 = vsub.f32 %v2030, %v2270
  %2272 = vmatmul.mubr.f32.gmra.mxu0 %v2271
  %v2273 = vpop.f32.mrf.mxu0
  %v2274 = vadd.f32 %v2196, %v2273
  %v2275 = vpop.f32.mrf.mxu0
  %2276 = vdwg.mxu0
  %2277 = vmatprep.subr.mxu0 0.0
  %2278 = vmatpush1.msra.mxu0 0.0
  %2279 = vmatprep.subr.mxu0 0.0
  %2280 = vmatpush1.msra.mxu0 0.0
  %2281 = vmatprep.subr.mxu0 0.0
  %2282 = vmatpush1.msra.mxu0 0.0
  %2283 = vmatprep.subr.mxu0 0.0
  %2284 = vmatpush1.msra.mxu0 0.0
  %2285 = vmatprep.subr.mxu0 0.0
  %2286 = vmatpush1.msra.mxu0 0.0
  %2287 = vmatprep.subr.mxu0 0.0
  %2288 = vmatpush1.msra.mxu0 0.0
  %2289 = vmatprep.subr.mxu0 0.0
  %2290 = vmatpush1.msra.mxu0 0.0
  %2291 = vmatprep.subr.mxu0 0.0
  %2292 = vmatpush1.msra.mxu0 0.0
  %2293 = vmatprep.subr.mxu0 0.0
  %2294 = vmatpush1.msra.mxu0 0.0
  %2295 = vmatprep.subr.mxu0 0.0
  %2296 = vmatpush1.msra.mxu0 0.0
  %2297 = vmatprep.subr.mxu0 0.0
  %2298 = vmatpush1.msra.mxu0 0.0
  %2299 = vmatprep.subr.mxu0 0.0
  %2300 = vmatpush1.msra.mxu0 0.0
  %2301 = vmatprep.subr.mxu0 0.0
  %2302 = vmatpush1.msra.mxu0 0.0
  %2303 = vmatprep.subr.mxu0 0.0
  %v2304 = vand.u32 %v2033, 4294901760
  %2305 = vmatpush1.msra.mxu0 %v2304
  %2306 = vmatprep.subr.mxu0 0.0
  %v2307 = vand.u32 %v2022, 4294901760
  %2308 = vmatpush1.msra.mxu0 %v2307
  %2309 = vmatprep.subr.mxu0 0.0
  %v2310 = vand.u32 %v2021, 4294901760
  %2311 = vmatpush1.msra.mxu0 %v2310
  %2312 = vmatprep.subr.mxu0 0.0
  %2313 = vmatpush2.msra.mxu0 0.0
  %2314 = vmatprep.subr.mxu0 0.0
  %2315 = vmatpush2.msra.mxu0 0.0
  %2316 = vmatprep.subr.mxu0 0.0
  %2317 = vmatpush2.msra.mxu0 0.0
  %2318 = vmatprep.subr.mxu0 0.0
  %2319 = vmatpush2.msra.mxu0 0.0
  %2320 = vmatprep.subr.mxu0 0.0
  %2321 = vmatpush2.msra.mxu0 0.0
  %2322 = vmatprep.subr.mxu0 0.0
  %2323 = vmatpush2.msra.mxu0 0.0
  %2324 = vmatprep.subr.mxu0 0.0
  %2325 = vmatpush2.msra.mxu0 0.0
  %2326 = vmatprep.subr.mxu0 0.0
  %2327 = vmatpush2.msra.mxu0 0.0
  %2328 = vmatprep.subr.mxu0 0.0
  %2329 = vmatpush2.msra.mxu0 0.0
  %2330 = vmatprep.subr.mxu0 0.0
  %2331 = vmatpush2.msra.mxu0 0.0
  %2332 = vmatprep.subr.mxu0 0.0
  %2333 = vmatpush2.msra.mxu0 0.0
  %2334 = vmatprep.subr.mxu0 0.0
  %2335 = vmatpush2.msra.mxu0 0.0
  %2336 = vmatprep.subr.mxu0 0.0
  %2337 = vmatpush2.msra.mxu0 0.0
  %2338 = vmatprep.subr.mxu0 0.0
  %2339 = vmatpush2.msra.mxu0 0.0
  %2340 = vmatprep.subr.mxu0 0.0
  %2341 = vmatpush2.msra.mxu0 0.0
  %2342 = vmatprep.subr.mxu0 0.0
  %2343 = vmatpush2.msra.mxu0 0.0
  %2344 = vmatprep.mubr.f32.mxu0 0.0
  %v2345 = vand.u32 %v2030, 4294901760
  %v2346 = vsub.f32 %v2030, %v2345
  %v2347 = vand.u32 %v2346, 4294901760
  %2348 = vmatmul.mubr.f32.gmra.mxu0 %v2347
  %v2349 = vpop.f32.mrf.mxu0
  %v2350 = vadd.f32 %v2274, %v2349
  %v2351 = vpop.f32.mrf.mxu0
  %2352 = vdwg.mxu0
  %2353 = vmatprep.subr.mxu0 0.0
  %2354 = vmatpush1.msra.mxu0 0.0
  %2355 = vmatprep.subr.mxu0 0.0
  %2356 = vmatpush1.msra.mxu0 0.0
  %2357 = vmatprep.subr.mxu0 0.0
  %2358 = vmatpush1.msra.mxu0 0.0
  %2359 = vmatprep.subr.mxu0 0.0
  %2360 = vmatpush1.msra.mxu0 0.0
  %2361 = vmatprep.subr.mxu0 0.0
  %2362 = vmatpush1.msra.mxu0 0.0
  %2363 = vmatprep.subr.mxu0 0.0
  %2364 = vmatpush1.msra.mxu0 0.0
  %2365 = vmatprep.subr.mxu0 0.0
  %2366 = vmatpush1.msra.mxu0 0.0
  %2367 = vmatprep.subr.mxu0 0.0
  %2368 = vmatpush1.msra.mxu0 0.0
  %2369 = vmatprep.subr.mxu0 0.0
  %2370 = vmatpush1.msra.mxu0 0.0
  %2371 = vmatprep.subr.mxu0 0.0
  %2372 = vmatpush1.msra.mxu0 0.0
  %2373 = vmatprep.subr.mxu0 0.0
  %2374 = vmatpush1.msra.mxu0 0.0
  %2375 = vmatprep.subr.mxu0 0.0
  %2376 = vmatpush1.msra.mxu0 0.0
  %2377 = vmatprep.subr.mxu0 0.0
  %2378 = vmatpush1.msra.mxu0 0.0
  %2379 = vmatprep.subr.mxu0 0.0
  %v2380 = vand.u32 %v2033, 4294901760
  %v2381 = vsub.f32 %v2033, %v2380
  %v2382 = vand.u32 %v2381, 4294901760
  %2383 = vmatpush1.msra.mxu0 %v2382
  %2384 = vmatprep.subr.mxu0 0.0
  %v2385 = vand.u32 %v2022, 4294901760
  %v2386 = vsub.f32 %v2022, %v2385
  %v2387 = vand.u32 %v2386, 4294901760
  %2388 = vmatpush1.msra.mxu0 %v2387
  %2389 = vmatprep.subr.mxu0 0.0
  %v2390 = vand.u32 %v2021, 4294901760
  %v2391 = vsub.f32 %v2021, %v2390
  %v2392 = vand.u32 %v2391, 4294901760
  %2393 = vmatpush1.msra.mxu0 %v2392
  %2394 = vmatprep.subr.mxu0 0.0
  %2395 = vmatpush2.msra.mxu0 0.0
  %2396 = vmatprep.subr.mxu0 0.0
  %2397 = vmatpush2.msra.mxu0 0.0
  %2398 = vmatprep.subr.mxu0 0.0
  %2399 = vmatpush2.msra.mxu0 0.0
  %2400 = vmatprep.subr.mxu0 0.0
  %2401 = vmatpush2.msra.mxu0 0.0
  %2402 = vmatprep.subr.mxu0 0.0
  %2403 = vmatpush2.msra.mxu0 0.0
  %2404 = vmatprep.subr.mxu0 0.0
  %2405 = vmatpush2.msra.mxu0 0.0
  %2406 = vmatprep.subr.mxu0 0.0
  %2407 = vmatpush2.msra.mxu0 0.0
  %2408 = vmatprep.subr.mxu0 0.0
  %2409 = vmatpush2.msra.mxu0 0.0
  %2410 = vmatprep.subr.mxu0 0.0
  %2411 = vmatpush2.msra.mxu0 0.0
  %2412 = vmatprep.subr.mxu0 0.0
  %2413 = vmatpush2.msra.mxu0 0.0
  %2414 = vmatprep.subr.mxu0 0.0
  %2415 = vmatpush2.msra.mxu0 0.0
  %2416 = vmatprep.subr.mxu0 0.0
  %2417 = vmatpush2.msra.mxu0 0.0
  %2418 = vmatprep.subr.mxu0 0.0
  %2419 = vmatpush2.msra.mxu0 0.0
  %2420 = vmatprep.subr.mxu0 0.0
  %2421 = vmatpush2.msra.mxu0 0.0
  %2422 = vmatprep.subr.mxu0 0.0
  %2423 = vmatpush2.msra.mxu0 0.0
  %2424 = vmatprep.subr.mxu0 0.0
  %2425 = vmatpush2.msra.mxu0 0.0
  %2426 = vmatprep.mubr.f32.mxu0 0.0
  %v2427 = vand.u32 %v2030, 4294901760
  %2428 = vmatmul.mubr.f32.gmra.mxu0 %v2427
  %v2429 = vpop.f32.mrf.mxu0
  %v2430 = vadd.f32 %v2350, %v2429
  %v2431 = vpop.f32.mrf.mxu0
  %2432 = vdwg.mxu0
  %2433 = vmatprep.subr.mxu0 0.0
  %2434 = vmatpush1.msra.mxu0 0.0
  %2435 = vmatprep.subr.mxu0 0.0
  %2436 = vmatpush1.msra.mxu0 0.0
  %2437 = vmatprep.subr.mxu0 0.0
  %2438 = vmatpush1.msra.mxu0 0.0
  %2439 = vmatprep.subr.mxu0 0.0
  %2440 = vmatpush1.msra.mxu0 0.0
  %2441 = vmatprep.subr.mxu0 0.0
  %2442 = vmatpush1.msra.mxu0 0.0
  %2443 = vmatprep.subr.mxu0 0.0
  %2444 = vmatpush1.msra.mxu0 0.0
  %2445 = vmatprep.subr.mxu0 0.0
  %2446 = vmatpush1.msra.mxu0 0.0
  %2447 = vmatprep.subr.mxu0 0.0
  %2448 = vmatpush1.msra.mxu0 0.0
  %2449 = vmatprep.subr.mxu0 0.0
  %2450 = vmatpush1.msra.mxu0 0.0
  %2451 = vmatprep.subr.mxu0 0.0
  %2452 = vmatpush1.msra.mxu0 0.0
  %2453 = vmatprep.subr.mxu0 0.0
  %2454 = vmatpush1.msra.mxu0 0.0
  %2455 = vmatprep.subr.mxu0 0.0
  %2456 = vmatpush1.msra.mxu0 0.0
  %2457 = vmatprep.subr.mxu0 0.0
  %2458 = vmatpush1.msra.mxu0 0.0
  %2459 = vmatprep.subr.mxu0 0.0
  %v2460 = vand.u32 %v2033, 4294901760
  %2461 = vmatpush1.msra.mxu0 %v2460
  %2462 = vmatprep.subr.mxu0 0.0
  %v2463 = vand.u32 %v2022, 4294901760
  %2464 = vmatpush1.msra.mxu0 %v2463
  %2465 = vmatprep.subr.mxu0 0.0
  %v2466 = vand.u32 %v2021, 4294901760
  %2467 = vmatpush1.msra.mxu0 %v2466
  %2468 = vmatprep.subr.mxu0 0.0
  %2469 = vmatpush2.msra.mxu0 0.0
  %2470 = vmatprep.subr.mxu0 0.0
  %2471 = vmatpush2.msra.mxu0 0.0
  %2472 = vmatprep.subr.mxu0 0.0
  %2473 = vmatpush2.msra.mxu0 0.0
  %2474 = vmatprep.subr.mxu0 0.0
  %2475 = vmatpush2.msra.mxu0 0.0
  %2476 = vmatprep.subr.mxu0 0.0
  %2477 = vmatpush2.msra.mxu0 0.0
  %2478 = vmatprep.subr.mxu0 0.0
  %2479 = vmatpush2.msra.mxu0 0.0
  %2480 = vmatprep.subr.mxu0 0.0
  %2481 = vmatpush2.msra.mxu0 0.0
  %2482 = vmatprep.subr.mxu0 0.0
  %2483 = vmatpush2.msra.mxu0 0.0
  %2484 = vmatprep.subr.mxu0 0.0
  %2485 = vmatpush2.msra.mxu0 0.0
  %2486 = vmatprep.subr.mxu0 0.0
  %2487 = vmatpush2.msra.mxu0 0.0
  %2488 = vmatprep.subr.mxu0 0.0
  %2489 = vmatpush2.msra.mxu0 0.0
  %2490 = vmatprep.subr.mxu0 0.0
  %2491 = vmatpush2.msra.mxu0 0.0
  %2492 = vmatprep.subr.mxu0 0.0
  %2493 = vmatpush2.msra.mxu0 0.0
  %2494 = vmatprep.subr.mxu0 0.0
  %2495 = vmatpush2.msra.mxu0 0.0
  %2496 = vmatprep.subr.mxu0 0.0
  %2497 = vmatpush2.msra.mxu0 0.0
  %2498 = vmatprep.subr.mxu0 0.0
  %2499 = vmatpush2.msra.mxu0 0.0
  %2500 = vmatprep.mubr.f32.mxu0 0.0
  %v2501 = vand.u32 %v2030, 4294901760
  %2502 = vmatmul.mubr.f32.gmra.mxu0 %v2501
  %v2503 = vpop.f32.mrf.mxu0
  %v2504 = vadd.f32 %v2430, %v2503
  %v2505 = vpop.f32.mrf.mxu0
  %2506 = vdwg.mxu0
  %2507 = vst [vmem:[%s5] sm:$0x3f] %v2504
  // Predicated region
  $region22: #{mlp_list_forward.1} parent=0 // pred_check
    _
  $region23: #{mlp_list_forward.1} parent=0 // pred_check_branch
    %2509 = sbr.rel (0) target = $region25
  $region24: #{mlp_list_forward.1} parent=0 // pred_region
    _
  $region25: #{mlp_list_forward.1} parent=0 // pred_fallthru
    _
  // Predicated region
  $region26: #{mlp_list_forward.1} parent=0 // pred_check
    _
  $region27: #{mlp_list_forward.1} parent=0 // pred_check_branch
    %2511 = sbr.rel (0) target = $region29
  $region28: #{mlp_list_forward.1} parent=0 // pred_region
    _
  $region29: #{mlp_list_forward.1} parent=0 // pred_fallthru
    _

</llo_original>
